<compile_context>
chip_gen: v7x
topology: tpu7x:2x2x1
jax: 0.10.0
libtpu: 0.0.40
codegen_flags: <defaults>
</compile_context>

<pallas_src>
import math

import jax
import jax.numpy as jnp
from jax.experimental import pallas as pl
from jax.experimental.pallas import tpu as pltpu


# ----------------------------------------------------------------------------
# Pallas kernel: full T-step rollout for one batch block, single invocation
# ----------------------------------------------------------------------------
def _fused_rollout_kernel(
    pos_gate_ref,   # (T, 4H)     pos_row[t] @ W_ih[:EMB].T + biases, g-cols x2
    ctx_ref,        # (bb, S, E)  encoder context (DMA'd once)
    maskadd_ref,    # (bb, S)     0 where valid, -1e30 where padded
    xh0_ref,        # (bb, E+H)   [prev0 | h0]
    c0_ref,         # (bb, H)
    w_xh_ref,       # (E+H, 4H)   [W_prev ; W_hh] pre-stacked, g-cols x2
    w_hq_ref,       # (H, 2E)     composed query projection (both heads)
    b_q_ref,        # (1, 2E)     composed query bias
    out_ref,        # (T, bb, OUT_W) lane-dense per-step output slab
):
    T = pos_gate_ref.shape[0]
    bb, S, E = ctx_ref.shape
    H = c0_ref.shape[1]

    # Loop-invariant operands: load / hoist once, stay vreg/VMEM resident.
    ctx = ctx_ref[...]                         # (bb, S, E)
    mask_add = maskadd_ref[...]                # (bb, S)
    w_xh = w_xh_ref[...]                       # (E+H, 4H)
    w_hq = w_hq_ref[...]                       # (H, 2E)
    b_q = b_q_ref[...]                         # (1, 2E)

    def attend(q):                             # q: (bb, E)
        # scores[b,s] = ctx[b,s,:] . q[b,:]   (batched MXU contraction)
        s = jnp.einsum("bqe,bse->bqs", q[:, None, :], ctx,
                       preferred_element_type=jnp.float32)[:, 0, :]   # (bb,S)
        s = s + mask_add                       # finite -1e30 mask -> no NaN
        m = jnp.max(s, axis=-1, keepdims=True)
        e = jnp.exp(s - m)
        wgt = e * pl.reciprocal(jnp.sum(e, axis=-1, keepdims=True), approx=True)
        wctx = jnp.einsum("bqs,bse->bqe", wgt[:, None, :], ctx,
                          preferred_element_type=jnp.float32)[:, 0, :]  # (bb,E)
        return wctx, wgt

    def step_fn(step, carry):
        xh, c = carry                          # xh = [prev | h]  (bb, E+H)

        # ---- LSTMCell: single fused input matmul + single EUP pass.
        # pos_gate row already contains (pos_emb @ W_ih_pos + b_ih + b_hh),
        # with the g-gate columns pre-scaled by 2 (as are w_xh's).
        gates = (jnp.dot(xh, w_xh, preferred_element_type=jnp.float32)
                 + pos_gate_ref[pl.ds(step, 1), :])                    # (bb,4H)
        sg = jax.nn.sigmoid(gates)             # one (bb, 4H) EUP pass
        i_g = sg[:, 0 * H:1 * H]
        f_g = sg[:, 1 * H:2 * H]
        g_t = 2.0 * sg[:, 2 * H:3 * H] - 1.0   # == tanh(g)  (cols pre-scaled)
        o_g = sg[:, 3 * H:4 * H]
        c_new = f_g * c + i_g * g_t
        h_new = o_g * jnp.tanh(c_new)

        # ---- Soft-dot attention, both heads; composed query projection
        # (one MXU push), softmax-invariant bias-dot term dropped.
        q_both = (jnp.dot(h_new, w_hq, preferred_element_type=jnp.float32)
                  + b_q)                                               # (bb,2E)
        obs, obs_w = attend(q_both[:, :E])     # head 0 (act_att params)
        act, act_w = attend(q_both[:, E:])     # head 1 (obs_att params)
        prev_new = obs + act

        # ---- direct static-offset stores into the lane-dense output slab
        sl = pl.ds(step, 1)
        out_ref[sl, :, 0:E]                                 = obs[None]
        out_ref[sl, :, E:2 * E]                             = act[None]
        out_ref[sl, :, 2 * E:2 * E + H]                     = h_new[None]
        out_ref[sl, :, 2 * E + H:2 * E + 2 * H]             = c_new[None]
        out_ref[sl, :, 2 * E + 2 * H:3 * E + 2 * H]         = prev_new[None]
        out_ref[sl, :, 3 * E + 2 * H:3 * E + 2 * H + S]     = obs_w[None]
        out_ref[sl, :, 3 * E + 2 * H + S:3 * E + 2 * H + 2 * S] = act_w[None]

        return jnp.concatenate([prev_new, h_new], axis=-1), c_new

    jax.lax.fori_loop(0, T, step_fn, (xh0_ref[...], c0_ref[...]), unroll=True)


def decode_steps_pallas(t0, num_steps, enc_ctx, seq_mask, h0, c0, prev0, params,
                        batch_block=None):
    """Run `num_steps` decoder steps (t0 .. t0+num_steps-1) in one pallas_call."""
    B, S, E = enc_ctx.shape
    H = h0.shape[1]
    T = int(num_steps)

    # Batch-block grid axis (parallel): both v7x TensorCores for large B;
    # single block at the toy B=2.
    if batch_block is None:
        batch_block = 8 if (B > 8 and B % 8 == 0) else B
    assert B % batch_block == 0
    bb = batch_block
    nb = B // bb

    # t-dependent LSTM-gate contribution (positional embedding @ W_ih + biases),
    # g-gate columns pre-scaled by 2 (single-sigmoid gate trick): (T, 4H)
    pos_rows = jax.lax.dynamic_slice_in_dim(params["pos_table"], t0, T, axis=0)
    pos_gate = (pos_rows @ params["w_ih_pos_t_g2"]
                + params["b_lstm_g2"]).astype(jnp.float32)
    # additive mask: 0 where valid, -1e30 where padded (finite -> no NaN)
    mask_add = jnp.where(seq_mask, -1e30, 0.0).astype(jnp.float32)
    # recurrent carry enters as one [prev | h] vector
    xh0 = jnp.concatenate([prev0, h0], axis=-1).astype(jnp.float32)

    slab_w = 3 * E + 2 * H + 2 * S
    out_w = ((slab_w + 127) // 128) * 128            # lane-dense output width

    w_xh = params["w_xh_t_g2"]                       # (E+H, 4H)
    w_hq = params["att_w_hq"]                        # (H, 2E)
    b_q = params["att_b_q"]                          # (1, 2E)

    def const2(shape):
        return pl.BlockSpec(shape, lambda i: (0, 0))

    in_specs = [
        const2(pos_gate.shape),                              # (T, 4H)
        pl.BlockSpec((bb, S, E), lambda i: (i, 0, 0)),       # enc_ctx
        pl.BlockSpec((bb, S), lambda i: (i, 0)),             # mask
        pl.BlockSpec((bb, E + H), lambda i: (i, 0)),         # xh0
        pl.BlockSpec((bb, H), lambda i: (i, 0)),             # c0
        const2(w_xh.shape),
        const2(w_hq.shape),
        const2(b_q.shape),
    ]
    out_specs = pl.BlockSpec((T, bb, out_w), lambda i: (0, i, 0))

    fn = pl.pallas_call(
        _fused_rollout_kernel,
        out_shape=jax.ShapeDtypeStruct((T, B, out_w), jnp.float32),
        grid_spec=pltpu.PrefetchScalarGridSpec(
            num_scalar_prefetch=0,
            grid=(nb,),
            in_specs=in_specs,
            out_specs=out_specs,
        ),
        compiler_params=pltpu.CompilerParams(
            dimension_semantics=("parallel",)),      # batch blocks independent
    )
    out = fn(pos_gate, enc_ctx.astype(jnp.float32), mask_add, xh0,
             c0.astype(jnp.float32), w_xh, w_hq, b_q)

    obs      = out[..., 0:E]
    act      = out[..., E:2 * E]
    h_all    = out[..., 2 * E:2 * E + H]
    c_all    = out[..., 2 * E + H:2 * E + 2 * H]
    prev_all = out[..., 2 * E + 2 * H:3 * E + 2 * H]
    obs_w    = out[..., 3 * E + 2 * H:3 * E + 2 * H + S]
    act_w    = out[..., 3 * E + 2 * H + S:3 * E + 2 * H + 2 * S]
    return obs, act, h_all, c_all, prev_all, obs_w, act_w


# ----------------------------------------------------------------------------
# Plain-JAX glue (module-level API)
# ----------------------------------------------------------------------------
def position_encoding_1d(n_pos, d_model):
    position = jnp.arange(n_pos, dtype=jnp.float32)[:, None]
    div_term = jnp.exp(
        jnp.arange(0, d_model, 2, dtype=jnp.float32) * (-math.log(10000.0) / d_model)
    )
    pe = jnp.zeros((n_pos, d_model), dtype=jnp.float32)
    pe = pe.at[:, 0::2].set(jnp.sin(position * div_term))
    pe = pe.at[:, 1::2].set(jnp.cos(position * div_term))
    return pe


def encode_instruction(seq, params):
    # TODO(synk): InstructionEncoder definition is not part of the provided
    # module; deterministic embedding + linear stand-in with correct shapes.
    tok = params["enc_emb"][seq]                                  # (B, S, T)
    enc_ctx = jnp.tanh(jnp.einsum("bst,te->bse", tok, params["enc_w_ctx"]))
    mean = enc_ctx.mean(axis=1)                                   # (B, E)
    h0 = jnp.tanh(mean @ params["enc_w_h0"])                      # (B, H)
    c0 = jnp.tanh(mean @ params["enc_w_c0"])                      # (B, H)
    return enc_ctx, h0, c0


def action_observation_decoder_forward(t, seq, seq_mask, seq_lens, params, state=None):
    """Mirrors ActionObservationDecoder.forward (one decode step)."""
    del seq_lens
    if state is None:
        enc_ctx, h, c = encode_instruction(seq, params)
        prev = enc_ctx.mean(axis=1)
    else:
        enc_ctx, h, c, prev = state
    obs, act, h_n, c_n, prev_n, obs_w, act_w = decode_steps_pallas(
        t, 1, enc_ctx, seq_mask, h, c, prev, params)
    obs, act, h_n, c_n, prev_n, obs_w, act_w = (
        obs[0], act[0], h_n[0], c_n[0], prev_n[0], obs_w[0], act_w[0])
    act1 = jnp.concatenate([act, h_n], axis=1)
    obs1 = jnp.concatenate([obs, h_n], axis=1)
    return act1, obs1, (enc_ctx, h_n, c_n, prev_n), act_w, obs_w


def action_observation_decoder_rollout(t0, num_steps, seq, seq_mask, seq_lens,
                                       params, state=None):
    """Fused decode: equivalent to calling forward() for t = t0..t0+T-1 with the
    state threaded through, but in a single pallas_call (optimized path)."""
    del seq_lens
    if state is None:
        enc_ctx, h, c = encode_instruction(seq, params)
        prev = enc_ctx.mean(axis=1)
    else:
        enc_ctx, h, c, prev = state
    obs, act, h_all, c_all, prev_all, obs_w, act_w = decode_steps_pallas(
        t0, num_steps, enc_ctx, seq_mask, h, c, prev, params)
    act1 = jnp.concatenate([act, h_all], axis=-1)     # (T, B, E+H)
    obs1 = jnp.concatenate([obs, h_all], axis=-1)     # (T, B, E+H)
    final_state = (enc_ctx, h_all[-1], c_all[-1], prev_all[-1])
    return act1, obs1, final_state, act_w, obs_w


# ----------------------------------------------------------------------------
# Pure-JAX reference (unfused math, for correctness checking)
# ----------------------------------------------------------------------------
def decode_steps_ref(t0, num_steps, enc_ctx, seq_mask, h0, c0, prev0, params):
    B, S, E = enc_ctx.shape
    H = h0.shape[1]
    A = params["att_bh"].shape[1] // 2
    mask_add = jnp.where(seq_mask, -1e30, 0.0).astype(jnp.float32)
    h, c, prev = h0, c0, prev0
    outs = []
    for i in range(num_steps):
        pos_gate = (params["pos_table"][t0 + i][None, :] @ params["w_ih_pos_t"]
                    + params["b_lstm"])
        gates = prev @ params["w_prev_t"] + h @ params["w_hh_t"] + pos_gate
        i_g = jax.nn.sigmoid(gates[:, :H])
        f_g = jax.nn.sigmoid(gates[:, H:2 * H])
        g_g = jnp.tanh(gates[:, 2 * H:3 * H])
        o_g = jax.nn.sigmoid(gates[:, 3 * H:])
        c = f_g * c + i_g * g_g
        h = o_g * jnp.tanh(c)
        target = h @ params["att_wh_t"] + params["att_bh"]            # (B, 2A)
        q2 = (target @ params["att_wv_blk"]).reshape(B, 2, E)         # (B, 2, E)
        const = (target * params["att_bv"]).reshape(B, 2, A).sum(-1)  # (B, 2)
        scores = (jnp.einsum("bhe,bse->bhs", q2, enc_ctx)
                  + const[:, :, None] + mask_add[:, None, :])
        w = jax.nn.softmax(scores, axis=-1)                           # (B, 2, S)
        weighted = jnp.einsum("bhs,bse->bhe", w, enc_ctx)             # (B, 2, E)
        obs, act = weighted[:, 0], weighted[:, 1]
        prev = act + obs
        outs.append((obs, act, h, c, prev, w[:, 0], w[:, 1]))
    return tuple(jnp.stack(x) for x in zip(*outs))


# ----------------------------------------------------------------------------
# Deterministic parameter construction (fused / pre-composed layouts)
# ----------------------------------------------------------------------------
def make_params(key, *, vocab, tok_dim, enc_hidden, dec_hidden, att_hidden,
                embed_size, max_steps):
    keys = jax.random.split(key, 16)
    d_in = embed_size + enc_hidden
    num_embeddings = max_steps * 5

    def init(k, shape, scale=0.1):
        return jax.random.normal(k, shape, dtype=jnp.float32) * scale

    # LSTMCell (PyTorch layout (4H, D_in)); stored pre-transposed & split.
    w_ih = init(keys[0], (4 * dec_hidden, d_in))
    w_hh = init(keys[1], (4 * dec_hidden, dec_hidden))
    b_ih = init(keys[2], (4 * dec_hidden,))
    b_hh = init(keys[3], (4 * dec_hidden,))

    # TODO(synk): Attention definition not provided; soft-dot attention with
    # query/context projections into att_hidden (bias=True) + masked softmax.
    def att_params(k0, k1, k2, k3):
        return dict(
            wh_t=init(k0, (att_hidden, dec_hidden)).T,   # (H, A)
            bh=init(k1, (1, att_hidden)),                # (1, A)
            wv=init(k2, (att_hidden, enc_hidden)),       # (A, E)
            bv=init(k3, (1, att_hidden)),                # (1, A)
        )

    act_att = att_params(keys[4], keys[5], keys[6], keys[7])
    obs_att = att_params(keys[8], keys[9], keys[10], keys[11])

    A, E, H = att_hidden, enc_hidden, dec_hidden
    wv_blk = jnp.zeros((2 * A, 2 * E), jnp.float32)
    wv_blk = wv_blk.at[:A, :E].set(act_att["wv"])
    wv_blk = wv_blk.at[A:, E:].set(obs_att["wv"])

    att_wh_t = jnp.concatenate([act_att["wh_t"], obs_att["wh_t"]], axis=1)  # (H,2A)
    att_bh = jnp.concatenate([act_att["bh"], obs_att["bh"]], axis=1)        # (1,2A)
    att_bv = jnp.concatenate([act_att["bv"], obs_att["bv"]], axis=1)        # (1,2A)

    w_ih_t = w_ih.T                                      # (d_in, 4H)
    w_ih_pos_t = w_ih_t[:embed_size, :]                  # (EMB, 4H)
    w_prev_t = w_ih_t[embed_size:, :]                    # (E, 4H)
    w_hh_t = w_hh.T                                      # (H, 4H)
    b_lstm = (b_ih + b_hh)[None, :]                      # (1, 4H)

    # g-gate columns pre-scaled by 2: tanh(g) = 2*sigmoid(2g) - 1 in-kernel.
    gate_scale = jnp.ones((4 * H,), jnp.float32).at[2 * H:3 * H].set(2.0)[None, :]
    w_xh_t_g2 = jnp.concatenate([w_prev_t, w_hh_t], axis=0) * gate_scale  # (E+H,4H)
    w_ih_pos_t_g2 = w_ih_pos_t * gate_scale
    b_lstm_g2 = b_lstm * gate_scale

    return dict(
        pos_table=position_encoding_1d(num_embeddings, embed_size),
        # --- reference (unfused) parameters ---
        w_ih_pos_t=w_ih_pos_t, w_prev_t=w_prev_t, w_hh_t=w_hh_t, b_lstm=b_lstm,
        att_wh_t=att_wh_t, att_bh=att_bh, att_wv_blk=wv_blk, att_bv=att_bv,
        # --- kernel (pre-fused / pre-composed) parameters ---
        w_xh_t_g2=w_xh_t_g2,                             # (E+H, 4H)
        w_ih_pos_t_g2=w_ih_pos_t_g2,                     # (EMB, 4H)
        b_lstm_g2=b_lstm_g2,                             # (1, 4H)
        att_w_hq=att_wh_t @ wv_blk,                      # (H, 2E)
        att_b_q=att_bh @ wv_blk,                         # (1, 2E)
        # --- stand-in encoder ---
        enc_emb=init(keys[12], (vocab, tok_dim)),
        enc_w_ctx=init(keys[13], (tok_dim, enc_hidden)),
        enc_w_h0=init(keys[14], (enc_hidden, dec_hidden)),
        enc_w_c0=init(keys[15], (enc_hidden, dec_hidden)),
    )


# ----------------------------------------------------------------------------
# Main
# ----------------------------------------------------------------------------
if __name__ == "__main__":
    B = 2            # batch_size
    S = 8            # instruction length
    VOCAB = 20
    TOK = 16
    ENC_H = 32       # enc_hidden_size(16) * 2 directions
    DEC_H = 32       # dec_hidden_size
    ATT_H = 32       # att_hidden_size
    EMB = 16         # action_embedding_size
    MAX_STEPS = 4    # -> num_embeddings = 20

    key = jax.random.PRNGKey(0)
    k_par, k_seq = jax.random.split(key)
    params = make_params(
        k_par, vocab=VOCAB, tok_dim=TOK, enc_hidden=ENC_H, dec_hidden=DEC_H,
        att_hidden=ATT_H, embed_size=EMB, max_steps=MAX_STEPS,
    )

    seq = jax.random.randint(k_seq, (B, S), 0, VOCAB, dtype=jnp.int32)
    seq_lens = jnp.array([S, 5], dtype=jnp.int32)
    seq_mask = jnp.arange(S)[None, :] >= seq_lens[:, None]   # True where padded

    # ---- per-step API (mirrors module.forward), two sequential steps ----
    act1, obs1, state, act_w, obs_w = action_observation_decoder_forward(
        0, seq, seq_mask, seq_lens, params, state=None)
    act1b, obs1b, state2, act_wb, obs_wb = action_observation_decoder_forward(
        1, seq, seq_mask, seq_lens, params, state=state)

    # ---- fused rollout: MAX_STEPS decode steps in a single pallas_call ----
    T = MAX_STEPS
    act1_all, obs1_all, fstate, act_w_all, obs_w_all = (
        action_observation_decoder_rollout(0, T, seq, seq_mask, seq_lens,
                                           params, state=None))

    # ---- pure-JAX reference for the decode loop ----
    enc_ctx, h0, c0 = encode_instruction(seq, params)
    prev0 = enc_ctx.mean(axis=1)
    r_obs, r_act, r_h, r_c, r_prev, r_obs_w, r_act_w = decode_steps_ref(
        0, T, enc_ctx, seq_mask, h0, c0, prev0, params)
    r_act1 = jnp.concatenate([r_act, r_h], axis=-1)
    r_obs1 = jnp.concatenate([r_obs, r_h], axis=-1)

    for x in (act1, obs1, act_w, obs_w, act1b, obs1b,
              act1_all, obs1_all, act_w_all, obs_w_all,
              fstate[1], fstate[2], fstate[3]):
        jax.block_until_ready(x)

    # shape checks (module contract)
    assert act1.shape == (B, ENC_H + DEC_H)
    assert obs1.shape == (B, ENC_H + DEC_H)
    assert act_w.shape == (B, S) and obs_w.shape == (B, S)
    assert act1_all.shape == (T, B, ENC_H + DEC_H)
    assert act_w_all.shape == (T, B, S)

    tol = dict(atol=2e-2, rtol=2e-2)
    # fused rollout vs pure-JAX reference
    assert bool(jnp.allclose(act1_all, r_act1, **tol))
    assert bool(jnp.allclose(obs1_all, r_obs1, **tol))
    assert bool(jnp.allclose(act_w_all, r_act_w, **tol))
    assert bool(jnp.allclose(obs_w_all, r_obs_w, **tol))
    # per-step API consistent with the fused rollout
    assert bool(jnp.allclose(act1, act1_all[0], **tol))
    assert bool(jnp.allclose(obs1, obs1_all[0], **tol))
    assert bool(jnp.allclose(act1b, act1_all[1], **tol))
    assert bool(jnp.allclose(obs1b, obs1_all[1], **tol))
    # attention weights: finite, normalized, zero on padded positions
    assert bool(jnp.all(jnp.isfinite(act1_all))) and bool(jnp.all(jnp.isfinite(obs1_all)))
    assert bool(jnp.allclose(jnp.sum(act_w_all, axis=-1), 1.0, atol=1e-2))
    assert bool(jnp.all(act_w_all[:, 1, 5:] < 1e-5))   # row 1 has seq_len 5

    print("KERNEL_OK")
</pallas_src>

<mosaic_0001>
module attributes {stable_mosaic.version = 11 : i64} {
  func.func @_fused_rollout_kernel(%arg0: i32, %arg1: memref<1x128xf32, #tpu.memory_space<vmem>>, %arg2: memref<2x8x32xf32, #tpu.memory_space<vmem>>, %arg3: memref<2x8xf32, #tpu.memory_space<vmem>>, %arg4: memref<2x64xf32, #tpu.memory_space<vmem>>, %arg5: memref<2x32xf32, #tpu.memory_space<vmem>>, %arg6: memref<64x128xf32, #tpu.memory_space<vmem>>, %arg7: memref<32x64xf32, #tpu.memory_space<vmem>>, %arg8: memref<1x64xf32, #tpu.memory_space<vmem>>, %arg9: memref<1x2x256xf32, #tpu.memory_space<vmem>>) attributes {dimension_semantics = [#tpu.dimension_semantics<parallel>], iteration_bounds = array<i64: 1>, scalar_prefetch = 0 : i64, scratch_operands = 0 : i64, tpu.core_type = #tpu.core_type<tc>, window_params = [{pipeline_mode = #tpu.pipeline_mode<synchronous>, transform_indices = @transform_0, window_bounds = array<i64: 1, 128>}, {transform_indices = @transform_1, window_bounds = array<i64: 2, 8, 32>}, {transform_indices = @transform_2, window_bounds = array<i64: 2, 8>}, {transform_indices = @transform_3, window_bounds = array<i64: 2, 64>}, {transform_indices = @transform_4, window_bounds = array<i64: 2, 32>}, {pipeline_mode = #tpu.pipeline_mode<synchronous>, transform_indices = @transform_5, window_bounds = array<i64: 64, 128>}, {pipeline_mode = #tpu.pipeline_mode<synchronous>, transform_indices = @transform_6, window_bounds = array<i64: 32, 64>}, {pipeline_mode = #tpu.pipeline_mode<synchronous>, transform_indices = @transform_7, window_bounds = array<i64: 1, 64>}, {transform_indices = @transform_8, window_bounds = array<i64: 1, 2, 256>}]} {
    %c0 = arith.constant 0 : index
    %c0_0 = arith.constant 0 : index
    %c0_1 = arith.constant 0 : index
    %0 = vector.load %arg2[%c0, %c0_0, %c0_1] : memref<2x8x32xf32, #tpu.memory_space<vmem>>, vector<2x8x32xf32>
    %c0_2 = arith.constant 0 : index
    %c0_3 = arith.constant 0 : index
    %1 = vector.load %arg3[%c0_2, %c0_3] : memref<2x8xf32, #tpu.memory_space<vmem>>, vector<2x8xf32>
    %c0_4 = arith.constant 0 : index
    %c0_5 = arith.constant 0 : index
    %2 = vector.load %arg6[%c0_4, %c0_5] : memref<64x128xf32, #tpu.memory_space<vmem>>, vector<64x128xf32>
    %c0_6 = arith.constant 0 : index
    %c0_7 = arith.constant 0 : index
    %3 = vector.load %arg7[%c0_6, %c0_7] : memref<32x64xf32, #tpu.memory_space<vmem>>, vector<32x64xf32>
    %c0_8 = arith.constant 0 : index
    %c0_9 = arith.constant 0 : index
    %4 = vector.load %arg8[%c0_8, %c0_9] : memref<1x64xf32, #tpu.memory_space<vmem>>, vector<1x64xf32>
    %c0_10 = arith.constant 0 : index
    %c0_11 = arith.constant 0 : index
    %5 = vector.load %arg4[%c0_10, %c0_11] : memref<2x64xf32, #tpu.memory_space<vmem>>, vector<2x64xf32>
    %c0_12 = arith.constant 0 : index
    %c0_13 = arith.constant 0 : index
    %6 = vector.load %arg5[%c0_12, %c0_13] : memref<2x32xf32, #tpu.memory_space<vmem>>, vector<2x32xf32>
    %c0_i32 = arith.constant 0 : i32
    %cst = arith.constant dense<0.000000e+00> : vector<2x128xf32>
    %7 = tpu.matmul %5, %2, %cst {dimension_numbers = #tpu.dot_dimension_numbers<[1], [0], [0], [1], [0, 0, 1, 1], [], []>} : vector<2x64xf32>, vector<64x128xf32>, vector<2x128xf32> -> vector<2x128xf32>
    %8 = arith.index_cast %c0_i32 : i32 to index
    %c0_14 = arith.constant 0 : index
    %9 = vector.load %arg1[%8, %c0_14] : memref<1x128xf32, #tpu.memory_space<vmem>>, vector<1x128xf32>
    %10 = vector.broadcast %9 : vector<1x128xf32> to vector<2x128xf32>
    %11 = arith.addf %7, %10 : vector<2x128xf32>
    %12 = arith.negf %11 : vector<2x128xf32>
    %13 = math.exp %12 : vector<2x128xf32>
    %cst_15 = arith.constant 1.000000e+00 : f32
    %14 = vector.broadcast %cst_15 : f32 to vector<2x128xf32>
    %15 = arith.addf %14, %13 : vector<2x128xf32>
    %16 = arith.divf %14, %15 : vector<2x128xf32>
    %17 = vector.extract_strided_slice %16 {offsets = [0, 0], sizes = [2, 32], strides = [1, 1]} : vector<2x128xf32> to vector<2x32xf32>
    %18 = vector.extract_strided_slice %16 {offsets = [0, 32], sizes = [2, 32], strides = [1, 1]} : vector<2x128xf32> to vector<2x32xf32>
    %19 = vector.extract_strided_slice %16 {offsets = [0, 64], sizes = [2, 32], strides = [1, 1]} : vector<2x128xf32> to vector<2x32xf32>
    %cst_16 = arith.constant 2.000000e+00 : f32
    %20 = vector.broadcast %cst_16 : f32 to vector<2x32xf32>
    %21 = arith.mulf %20, %19 : vector<2x32xf32>
    %cst_17 = arith.constant 1.000000e+00 : f32
    %22 = vector.broadcast %cst_17 : f32 to vector<2x32xf32>
    %23 = arith.subf %21, %22 : vector<2x32xf32>
    %24 = vector.extract_strided_slice %16 {offsets = [0, 96], sizes = [2, 32], strides = [1, 1]} : vector<2x128xf32> to vector<2x32xf32>
    %25 = arith.mulf %18, %6 : vector<2x32xf32>
    %26 = arith.mulf %17, %23 : vector<2x32xf32>
    %27 = arith.addf %25, %26 : vector<2x32xf32>
    %28 = math.tanh %27 : vector<2x32xf32>
    %29 = arith.mulf %24, %28 : vector<2x32xf32>
    %cst_18 = arith.constant dense<0.000000e+00> : vector<2x64xf32>
    %30 = tpu.matmul %29, %3, %cst_18 {dimension_numbers = #tpu.dot_dimension_numbers<[1], [0], [0], [1], [0, 0, 1, 1], [], []>} : vector<2x32xf32>, vector<32x64xf32>, vector<2x64xf32> -> vector<2x64xf32>
    %31 = vector.broadcast %4 : vector<1x64xf32> to vector<2x64xf32>
    %32 = arith.addf %30, %31 : vector<2x64xf32>
    %33 = vector.extract_strided_slice %32 {offsets = [0, 0], sizes = [2, 32], strides = [1, 1]} : vector<2x64xf32> to vector<2x32xf32>
    %34 = vector.shape_cast %33 : vector<2x32xf32> to vector<2x1x32xf32>
    "tpu.trace_start"() <{level = 10 : i32, message = "bqe,bse->bqs"}> : () -> ()
    %cst_19 = arith.constant dense<0.000000e+00> : vector<2x1x8xf32>
    %35 = tpu.matmul %34, %0, %cst_19 {dimension_numbers = #tpu.dot_dimension_numbers<[2], [2], [1], [1], [0, 0, 0, 1, 1, 1], [0], [0]>} : vector<2x1x32xf32>, vector<2x8x32xf32>, vector<2x1x8xf32> -> vector<2x1x8xf32>
    "tpu.trace_stop"() : () -> ()
    %36 = vector.shape_cast %35 : vector<2x1x8xf32> to vector<2x8xf32>
    %37 = arith.addf %36, %1 : vector<2x8xf32>
    %cst_20 = arith.constant dense<0xFF800000> : vector<2xf32>
    %38 = vector.multi_reduction <maximumf>, %37, %cst_20 [1] : vector<2x8xf32> to vector<2xf32>
    %39 = vector.shape_cast %38 : vector<2xf32> to vector<2x1xf32>
    %40 = vector.broadcast %39 : vector<2x1xf32> to vector<2x8xf32>
    %41 = arith.subf %37, %40 : vector<2x8xf32>
    %42 = math.exp %41 : vector<2x8xf32>
    %cst_21 = arith.constant dense<0.000000e+00> : vector<2xf32>
    %43 = vector.multi_reduction <add>, %42, %cst_21 [1] : vector<2x8xf32> to vector<2xf32>
    %44 = vector.shape_cast %43 : vector<2xf32> to vector<2x1xf32>
    %45 = tpu.reciprocal %44 {approx = true} : vector<2x1xf32> -> vector<2x1xf32>
    %46 = vector.broadcast %45 : vector<2x1xf32> to vector<2x8xf32>
    %47 = arith.mulf %42, %46 : vector<2x8xf32>
    %48 = vector.shape_cast %47 : vector<2x8xf32> to vector<2x1x8xf32>
    "tpu.trace_start"() <{level = 10 : i32, message = "bqs,bse->bqe"}> : () -> ()
    %cst_22 = arith.constant dense<0.000000e+00> : vector<2x1x32xf32>
    %49 = tpu.matmul %48, %0, %cst_22 {dimension_numbers = #tpu.dot_dimension_numbers<[2], [1], [1], [2], [0, 0, 0, 1, 1, 2], [0], [0]>} : vector<2x1x8xf32>, vector<2x8x32xf32>, vector<2x1x32xf32> -> vector<2x1x32xf32>
    "tpu.trace_stop"() : () -> ()
    %50 = vector.shape_cast %49 : vector<2x1x32xf32> to vector<2x32xf32>
    %51 = vector.extract_strided_slice %32 {offsets = [0, 32], sizes = [2, 32], strides = [1, 1]} : vector<2x64xf32> to vector<2x32xf32>
    %52 = vector.shape_cast %51 : vector<2x32xf32> to vector<2x1x32xf32>
    "tpu.trace_start"() <{level = 10 : i32, message = "bqe,bse->bqs"}> : () -> ()
    %cst_23 = arith.constant dense<0.000000e+00> : vector<2x1x8xf32>
    %53 = tpu.matmul %52, %0, %cst_23 {dimension_numbers = #tpu.dot_dimension_numbers<[2], [2], [1], [1], [0, 0, 0, 1, 1, 1], [0], [0]>} : vector<2x1x32xf32>, vector<2x8x32xf32>, vector<2x1x8xf32> -> vector<2x1x8xf32>
    "tpu.trace_stop"() : () -> ()
    %54 = vector.shape_cast %53 : vector<2x1x8xf32> to vector<2x8xf32>
    %55 = arith.addf %54, %1 : vector<2x8xf32>
    %cst_24 = arith.constant dense<0xFF800000> : vector<2xf32>
    %56 = vector.multi_reduction <maximumf>, %55, %cst_24 [1] : vector<2x8xf32> to vector<2xf32>
    %57 = vector.shape_cast %56 : vector<2xf32> to vector<2x1xf32>
    %58 = vector.broadcast %57 : vector<2x1xf32> to vector<2x8xf32>
    %59 = arith.subf %55, %58 : vector<2x8xf32>
    %60 = math.exp %59 : vector<2x8xf32>
    %cst_25 = arith.constant dense<0.000000e+00> : vector<2xf32>
    %61 = vector.multi_reduction <add>, %60, %cst_25 [1] : vector<2x8xf32> to vector<2xf32>
    %62 = vector.shape_cast %61 : vector<2xf32> to vector<2x1xf32>
    %63 = tpu.reciprocal %62 {approx = true} : vector<2x1xf32> -> vector<2x1xf32>
    %64 = vector.broadcast %63 : vector<2x1xf32> to vector<2x8xf32>
    %65 = arith.mulf %60, %64 : vector<2x8xf32>
    %66 = vector.shape_cast %65 : vector<2x8xf32> to vector<2x1x8xf32>
    "tpu.trace_start"() <{level = 10 : i32, message = "bqs,bse->bqe"}> : () -> ()
    %cst_26 = arith.constant dense<0.000000e+00> : vector<2x1x32xf32>
    %67 = tpu.matmul %66, %0, %cst_26 {dimension_numbers = #tpu.dot_dimension_numbers<[2], [1], [1], [2], [0, 0, 0, 1, 1, 2], [0], [0]>} : vector<2x1x8xf32>, vector<2x8x32xf32>, vector<2x1x32xf32> -> vector<2x1x32xf32>
    "tpu.trace_stop"() : () -> ()
    %68 = vector.shape_cast %67 : vector<2x1x32xf32> to vector<2x32xf32>
    %69 = arith.addf %50, %68 : vector<2x32xf32>
    %70 = vector.shape_cast %50 : vector<2x32xf32> to vector<1x2x32xf32>
    %71 = arith.index_cast %c0_i32 : i32 to index
    %c0_27 = arith.constant 0 : index
    %c0_28 = arith.constant 0 : index
    %72 = vector.load %arg9[%71, %c0_27, %c0_28] : memref<1x2x256xf32, #tpu.memory_space<vmem>>, vector<1x2x32xf32>
    tpu.vector_store %arg9[%71, %c0_27, %c0_28], %70 {strides = array<i32>} : memref<1x2x256xf32, #tpu.memory_space<vmem>>, vector<1x2x32xf32>,
    %73 = vector.shape_cast %68 : vector<2x32xf32> to vector<1x2x32xf32>
    %74 = arith.index_cast %c0_i32 : i32 to index
    %c0_29 = arith.constant 0 : index
    %c32 = arith.constant 32 : index
    %75 = vector.load %arg9[%74, %c0_29, %c32] : memref<1x2x256xf32, #tpu.memory_space<vmem>>, vector<1x2x32xf32>
    tpu.vector_store %arg9[%74, %c0_29, %c32], %73 {strides = array<i32>} : memref<1x2x256xf32, #tpu.memory_space<vmem>>, vector<1x2x32xf32>,
    %76 = vector.shape_cast %29 : vector<2x32xf32> to vector<1x2x32xf32>
    %77 = arith.index_cast %c0_i32 : i32 to index
    %c0_30 = arith.constant 0 : index
    %c64 = arith.constant 64 : index
    %78 = vector.load %arg9[%77, %c0_30, %c64] : memref<1x2x256xf32, #tpu.memory_space<vmem>>, vector<1x2x32xf32>
    tpu.vector_store %arg9[%77, %c0_30, %c64], %76 {strides = array<i32>} : memref<1x2x256xf32, #tpu.memory_space<vmem>>, vector<1x2x32xf32>,
    %79 = vector.shape_cast %27 : vector<2x32xf32> to vector<1x2x32xf32>
    %80 = arith.index_cast %c0_i32 : i32 to index
    %c0_31 = arith.constant 0 : index
    %c96 = arith.constant 96 : index
    %81 = vector.load %arg9[%80, %c0_31, %c96] : memref<1x2x256xf32, #tpu.memory_space<vmem>>, vector<1x2x32xf32>
    tpu.vector_store %arg9[%80, %c0_31, %c96], %79 {strides = array<i32>} : memref<1x2x256xf32, #tpu.memory_space<vmem>>, vector<1x2x32xf32>,
    %82 = vector.shape_cast %69 : vector<2x32xf32> to vector<1x2x32xf32>
    %83 = arith.index_cast %c0_i32 : i32 to index
    %c0_32 = arith.constant 0 : index
    %c128 = arith.constant 128 : index
    %84 = vector.load %arg9[%83, %c0_32, %c128] : memref<1x2x256xf32, #tpu.memory_space<vmem>>, vector<1x2x32xf32>
    tpu.vector_store %arg9[%83, %c0_32, %c128], %82 {strides = array<i32>} : memref<1x2x256xf32, #tpu.memory_space<vmem>>, vector<1x2x32xf32>,
    %85 = vector.shape_cast %47 : vector<2x8xf32> to vector<1x2x8xf32>
    %86 = arith.index_cast %c0_i32 : i32 to index
    %c0_33 = arith.constant 0 : index
    %c160 = arith.constant 160 : index
    %87 = vector.load %arg9[%86, %c0_33, %c160] : memref<1x2x256xf32, #tpu.memory_space<vmem>>, vector<1x2x8xf32>
    tpu.vector_store %arg9[%86, %c0_33, %c160], %85 {strides = array<i32>} : memref<1x2x256xf32, #tpu.memory_space<vmem>>, vector<1x2x8xf32>,
    %88 = vector.shape_cast %65 : vector<2x8xf32> to vector<1x2x8xf32>
    %89 = arith.index_cast %c0_i32 : i32 to index
    %c0_34 = arith.constant 0 : index
    %c168 = arith.constant 168 : index
    %90 = vector.load %arg9[%89, %c0_34, %c168] : memref<1x2x256xf32, #tpu.memory_space<vmem>>, vector<1x2x8xf32>
    tpu.vector_store %arg9[%89, %c0_34, %c168], %88 {strides = array<i32>} : memref<1x2x256xf32, #tpu.memory_space<vmem>>, vector<1x2x8xf32>,
    %91 = tpu.concatenate %69, %29 in 1 : vector<2x32xf32>, vector<2x32xf32> -> vector<2x64xf32>
    %c1_i32 = arith.constant 1 : i32
    return
  }
  func.func @transform_0(%arg0: i32) -> (i32, i32) {
    %c0_i32 = arith.constant 0 : i32
    %c0_i32_0 = arith.constant 0 : i32
    %c0_i32_1 = arith.constant 0 : i32
    return %c0_i32, %c0_i32_0 : i32, i32
  }
  func.func @transform_1(%arg0: i32) -> (i32, i32, i32) {
    %c0_i32 = arith.constant 0 : i32
    %c0_i32_0 = arith.constant 0 : i32
    %c0_i32_1 = arith.constant 0 : i32
    return %arg0, %c0_i32, %c0_i32_0 : i32, i32, i32
  }
  func.func @transform_2(%arg0: i32) -> (i32, i32) {
    %c0_i32 = arith.constant 0 : i32
    %c0_i32_0 = arith.constant 0 : i32
    return %arg0, %c0_i32 : i32, i32
  }
  func.func @transform_3(%arg0: i32) -> (i32, i32) {
    %c0_i32 = arith.constant 0 : i32
    %c0_i32_0 = arith.constant 0 : i32
    return %arg0, %c0_i32 : i32, i32
  }
  func.func @transform_4(%arg0: i32) -> (i32, i32) {
    %c0_i32 = arith.constant 0 : i32
    %c0_i32_0 = arith.constant 0 : i32
    return %arg0, %c0_i32 : i32, i32
  }
  func.func @transform_5(%arg0: i32) -> (i32, i32) {
    %c0_i32 = arith.constant 0 : i32
    %c0_i32_0 = arith.constant 0 : i32
    %c0_i32_1 = arith.constant 0 : i32
    return %c0_i32, %c0_i32_0 : i32, i32
  }
  func.func @transform_6(%arg0: i32) -> (i32, i32) {
    %c0_i32 = arith.constant 0 : i32
    %c0_i32_0 = arith.constant 0 : i32
    %c0_i32_1 = arith.constant 0 : i32
    return %c0_i32, %c0_i32_0 : i32, i32
  }
  func.func @transform_7(%arg0: i32) -> (i32, i32) {
    %c0_i32 = arith.constant 0 : i32
    %c0_i32_0 = arith.constant 0 : i32
    %c0_i32_1 = arith.constant 0 : i32
    return %c0_i32, %c0_i32_0 : i32, i32
  }
  func.func @transform_8(%arg0: i32) -> (i32, i32, i32) {
    %c0_i32 = arith.constant 0 : i32
    %c0_i32_0 = arith.constant 0 : i32
    %c0_i32_1 = arith.constant 0 : i32
    return %c0_i32, %arg0, %c0_i32_0 : i32, i32, i32
  }
}

</mosaic_0001>

<llo_original>
// kernel: tpu_custom_call.1
$region0: #{tpu_custom_call.1}
  #allocation0 [shape = 'u32[]', space=smem, size = 0x4, offset = 0x4, fixed_abs, tag = 'smem constant byte address 0x4 - core index']
  #allocation1 [shape = 'u32[144,128]{1,0:T(1,128)}', space=vmem, size = 0x12000, scoped, tag = 'internal scratch']
  %s0 = inlined_call_operand.hbm [shape: f32[1,128], index: 0, kind: input, shape index: {}]
  %s1 = inlined_call_operand.hbm [shape: f32[2,8,32], index: 1, kind: input, shape index: {}]
  %s2 = inlined_call_operand.vmem [shape: f32[2,8], index: 2, kind: input, shape index: {}]
  %s3 = inlined_call_operand.vmem [shape: f32[2,64], index: 3, kind: input, shape index: {}]
  %s4 = inlined_call_operand.vmem [shape: f32[2,32], index: 4, kind: input, shape index: {}]
  %s5 = inlined_call_operand.hbm [shape: f32[64,128], index: 5, kind: input, shape index: {}]
  %s6 = inlined_call_operand.hbm [shape: f32[32,64], index: 6, kind: input, shape index: {}]
  %s7 = inlined_call_operand.vmem [shape: f32[1,64], index: 7, kind: input, shape index: {}]
  %s8 = inlined_call_operand.hbm [shape: f32[1,2,256], index: 8, kind: output, shape index: {}]
  %s9 = sld [smem:[#allocation0]]
  $region58: #{tpu_custom_call.1} parent=0
    _
  %s11 = ssub.s32 1, %s9
  %s12 = scalar_select 0, %s11, %s9
  $region1: #{tpu_custom_call.1} parent=0
    #allocation2 [shape = 'u8[512]{0}', space=vmem, size = 0x400, scoped, tag = 'input window, operand 0, single buffered']
    #allocation3 [shape = 's32[1]{0}', space=sflag, size = 0x4, scoped, tag = 'scoped memory for tpu_custom_call.1']
    #allocation4 [shape = 's32[1]{0}', space=sflag, size = 0x4, scoped, tag = 'scoped memory for tpu_custom_call.1']
    #allocation5 [shape = 'u8[8192]{0}', space=vmem, size = 0x2000, scoped, tag = 'input window, operand 1, single buffered']
    #allocation6 [shape = 's32[1]{0}', space=sflag, size = 0x4, scoped, tag = 'scoped memory for tpu_custom_call.1']
    #allocation7 [shape = 'u8[32768]{0}', space=vmem, size = 0x8000, scoped, tag = 'input window, operand 5, single buffered']
    #allocation8 [shape = 'u8[16384]{0}', space=vmem, size = 0x4000, scoped, tag = 'input window, operand 6, single buffered']
    #allocation9 [shape = 's32[1]{0}', space=sflag, size = 0x4, scoped, tag = 'scoped memory for tpu_custom_call.1']
    #allocation10 [shape = 'u8[2048]{0}', space=vmem, size = 0x800, scoped, tag = 'output window, operand 0, single buffered']
    %13 = vsyncpa [#allocation3], 0
    %14 = vsyncpa [#allocation6], 0
    %15 = vsyncpa [#allocation9], 0
    %16 = vsyncpa [#allocation4], 0
    // Predicated region
    $region2: #{tpu_custom_call.1} parent=1 // pred_check
      _
    $region3: #{tpu_custom_call.1} parent=1 // pred_check_branch
      %18 = sbr.rel (0) target = $region5
    $region4: #{tpu_custom_call.1} parent=1 // pred_region
      %s20 = ssub.s32 16, 16
      %21 = vsyncadd [#allocation3], %s20
      %s23 = sshll.u32 [#allocation2], 4
      %s24 = int_to_ptr.vmem [resolvable:$true] %s23
      %26 = dma.hbm_to_vmem [thread:$0]  %s0, 16, %s24, [#allocation3]
    $region5: #{tpu_custom_call.1} parent=1 // pred_fallthru
      _
    // Predicated region
    $region6: #{tpu_custom_call.1} parent=1 // pred_check
      _
    $region7: #{tpu_custom_call.1} parent=1 // pred_check_branch
      %28 = sbr.rel (0) target = $region9
    $region8: #{tpu_custom_call.1} parent=1 // pred_region
      %s30 = ssub.s32 256, 256
      %31 = vsyncadd [#allocation6], %s30
      %s32 = sshll.u32 [#allocation5], 4
      %s33 = int_to_ptr.vmem [resolvable:$true] %s32
      %38 = dma.hbm_to_vmem [thread:$0]  %s1, 256, %s33, [#allocation6], 128, 128, 8
    $region9: #{tpu_custom_call.1} parent=1 // pred_fallthru
      _
    // Predicated region
    $region10: #{tpu_custom_call.1} parent=1 // pred_check
      _
    $region11: #{tpu_custom_call.1} parent=1 // pred_check_branch
      %40 = sbr.rel (0) target = $region13
    $region12: #{tpu_custom_call.1} parent=1 // pred_region
      _
    $region13: #{tpu_custom_call.1} parent=1 // pred_fallthru
      _
    // Predicated region
    $region14: #{tpu_custom_call.1} parent=1 // pred_check
      _
    $region15: #{tpu_custom_call.1} parent=1 // pred_check_branch
      %42 = sbr.rel (0) target = $region17
    $region16: #{tpu_custom_call.1} parent=1 // pred_region
      _
    $region17: #{tpu_custom_call.1} parent=1 // pred_fallthru
      _
    // Predicated region
    $region18: #{tpu_custom_call.1} parent=1 // pred_check
      _
    $region19: #{tpu_custom_call.1} parent=1 // pred_check_branch
      %44 = sbr.rel (0) target = $region21
    $region20: #{tpu_custom_call.1} parent=1 // pred_region
      _
    $region21: #{tpu_custom_call.1} parent=1 // pred_fallthru
      _
    // Predicated region
    $region22: #{tpu_custom_call.1} parent=1 // pred_check
      _
    $region23: #{tpu_custom_call.1} parent=1 // pred_check_branch
      %46 = sbr.rel (0) target = $region25
    $region24: #{tpu_custom_call.1} parent=1 // pred_region
      %s48 = ssub.s32 1024, 1024
      %49 = vsyncadd [#allocation6], %s48
      %s50 = sshll.u32 [#allocation7], 4
      %s51 = int_to_ptr.vmem [resolvable:$true] %s50
      %56 = dma.hbm_to_vmem [thread:$0]  %s5, 1024, %s51, [#allocation6], 128, 128, 8
    $region25: #{tpu_custom_call.1} parent=1 // pred_fallthru
      _
    // Predicated region
    $region26: #{tpu_custom_call.1} parent=1 // pred_check
      _
    $region27: #{tpu_custom_call.1} parent=1 // pred_check_branch
      %58 = sbr.rel (0) target = $region29
    $region28: #{tpu_custom_call.1} parent=1 // pred_region
      %s60 = ssub.s32 512, 512
      %61 = vsyncadd [#allocation9], %s60
      %s62 = sshll.u32 [#allocation8], 4
      %s63 = int_to_ptr.vmem [resolvable:$true] %s62
      %68 = dma.hbm_to_vmem [thread:$0]  %s6, 512, %s63, [#allocation9], 128, 128, 8
    $region29: #{tpu_custom_call.1} parent=1 // pred_fallthru
      _
    // Predicated region
    $region30: #{tpu_custom_call.1} parent=1 // pred_check
      _
    $region31: #{tpu_custom_call.1} parent=1 // pred_check_branch
      %70 = sbr.rel (0) target = $region33
    $region32: #{tpu_custom_call.1} parent=1 // pred_region
      _
    $region33: #{tpu_custom_call.1} parent=1 // pred_fallthru
      _
    // Predicated region
    $region34: #{tpu_custom_call.1} parent=1 // pred_check
      _
    $region35: #{tpu_custom_call.1} parent=1 // pred_check_branch
      %72 = sbr.rel (0) target = $region37
    $region36: #{tpu_custom_call.1} parent=1 // pred_region
      %73 = dma.done [#allocation3], 16
    $region37: #{tpu_custom_call.1} parent=1 // pred_fallthru
      _
    // Predicated region
    $region38: #{tpu_custom_call.1} parent=1 // pred_check
      _
    $region39: #{tpu_custom_call.1} parent=1 // pred_check_branch
      %75 = sbr.rel (0) target = $region41
    $region40: #{tpu_custom_call.1} parent=1 // pred_region
      %76 = dma.done [#allocation6], 256
    $region41: #{tpu_custom_call.1} parent=1 // pred_fallthru
      _
    // Predicated region
    $region42: #{tpu_custom_call.1} parent=1 // pred_check
      _
    $region43: #{tpu_custom_call.1} parent=1 // pred_check_branch
      %78 = sbr.rel (0) target = $region45
    $region44: #{tpu_custom_call.1} parent=1 // pred_region
      %79 = dma.done [#allocation6], 1024
    $region45: #{tpu_custom_call.1} parent=1 // pred_fallthru
      _
    // Predicated region
    $region46: #{tpu_custom_call.1} parent=1 // pred_check
      _
    $region47: #{tpu_custom_call.1} parent=1 // pred_check_branch
      %81 = sbr.rel (0) target = $region49
    $region48: #{tpu_custom_call.1} parent=1 // pred_region
      %82 = dma.done [#allocation9], 512
    $region49: #{tpu_custom_call.1} parent=1 // pred_fallthru
      _
    %v83 = vld [vmem:[#allocation5] sm:$0xff]
    %v84 = vld [vmem:[#allocation5 + $0x8] sm:$0xff]
    %v85 = vld [vmem:[%s2] sm:$0x3]
    %v86 = vld [vmem:[#allocation7] sm:$0xff]
    %v87 = vld [vmem:[#allocation7 + $0x8] sm:$0xff]
    %v88 = vld [vmem:[#allocation7 + $0x10] sm:$0xff]
    %v89 = vld [vmem:[#allocation7 + $0x18] sm:$0xff]
    %v90 = vld [vmem:[#allocation7 + $0x20] sm:$0xff]
    %v91 = vld [vmem:[#allocation7 + $0x28] sm:$0xff]
    %v92 = vld [vmem:[#allocation7 + $0x30] sm:$0xff]
    %v93 = vld [vmem:[#allocation7 + $0x38] sm:$0xff]
    %v94 = vld [vmem:[#allocation8] sm:$0xff]
    %v95 = vld [vmem:[#allocation8 + $0x8] sm:$0xff]
    %v96 = vld [vmem:[#allocation8 + $0x10] sm:$0xff]
    %v97 = vld [vmem:[#allocation8 + $0x18] sm:$0xff]
    %v98 = vld [vmem:[%s7] sm:$0x1]
    %v99 = vld [vmem:[%s3] sm:$0x3]
    %v100 = vld [vmem:[%s4] sm:$0x3]
    %v101 = vld [vmem:[#allocation2] sm:$0x1]
    %v103 = vlaneseq
    %v104 = vshrl.u32 %v103, 7
    %v105 = vsub.s32 0, %v104
    %v106 = vrot.slane %v101, %v105
    %vm108 = vcmask 523264
    %v110 = vsel %vm108, %v99, 0
    %112 = vmatprep.subr.mxu0 0.0
    %113 = vmatpush1.msra.mxu0 %v86
    %114 = vmatprep.subr.mxu0 0.0
    %115 = vmatpush1.msra.mxu0 %v87
    %116 = vmatprep.subr.mxu0 0.0
    %117 = vmatpush1.msra.mxu0 %v88
    %118 = vmatprep.subr.mxu0 0.0
    %119 = vmatpush1.msra.mxu0 %v89
    %120 = vmatprep.subr.mxu0 0.0
    %121 = vmatpush1.msra.mxu0 %v90
    %122 = vmatprep.subr.mxu0 0.0
    %123 = vmatpush1.msra.mxu0 %v91
    %124 = vmatprep.subr.mxu0 0.0
    %125 = vmatpush1.msra.mxu0 %v92
    %126 = vmatprep.subr.mxu0 0.0
    %127 = vmatpush1.msra.mxu0 %v93
    %128 = vmatprep.subr.mxu0 0.0
    %129 = vmatpush1.msra.mxu0 0.0
    %130 = vmatprep.subr.mxu0 0.0
    %131 = vmatpush1.msra.mxu0 0.0
    %132 = vmatprep.subr.mxu0 0.0
    %133 = vmatpush1.msra.mxu0 0.0
    %134 = vmatprep.subr.mxu0 0.0
    %135 = vmatpush1.msra.mxu0 0.0
    %136 = vmatprep.subr.mxu0 0.0
    %137 = vmatpush1.msra.mxu0 0.0
    %138 = vmatprep.subr.mxu0 0.0
    %139 = vmatpush1.msra.mxu0 0.0
    %140 = vmatprep.subr.mxu0 0.0
    %141 = vmatpush1.msra.mxu0 0.0
    %142 = vmatprep.subr.mxu0 0.0
    %143 = vmatpush1.msra.mxu0 0.0
    %144 = vmatprep.subr.mxu0 0.0
    %145 = vmatpush1.msra.mxu0 0.0
    %146 = vmatprep.subr.mxu0 0.0
    %147 = vmatpush1.msra.mxu0 0.0
    %148 = vmatprep.subr.mxu0 0.0
    %149 = vmatpush1.msra.mxu0 0.0
    %150 = vmatprep.subr.mxu0 0.0
    %151 = vmatpush1.msra.mxu0 0.0
    %152 = vmatprep.subr.mxu0 0.0
    %153 = vmatpush1.msra.mxu0 0.0
    %154 = vmatprep.subr.mxu0 0.0
    %155 = vmatpush1.msra.mxu0 0.0
    %156 = vmatprep.subr.mxu0 0.0
    %157 = vmatpush1.msra.mxu0 0.0
    %158 = vmatprep.subr.mxu0 0.0
    %159 = vmatpush1.msra.mxu0 0.0
    %160 = vmatprep.subr.mxu0 0.0
    %161 = vmatpush1.msra.mxu0 0.0
    %162 = vmatprep.subr.mxu0 0.0
    %163 = vmatpush1.msra.mxu0 0.0
    %164 = vmatprep.subr.mxu0 0.0
    %165 = vmatpush1.msra.mxu0 0.0
    %166 = vmatprep.subr.mxu0 0.0
    %167 = vmatpush1.msra.mxu0 0.0
    %168 = vmatprep.subr.mxu0 0.0
    %169 = vmatpush1.msra.mxu0 0.0
    %170 = vmatprep.subr.mxu0 0.0
    %171 = vmatpush1.msra.mxu0 0.0
    %172 = vmatprep.subr.mxu0 0.0
    %173 = vmatpush1.msra.mxu0 0.0
    %174 = vmatprep.subr.mxu0 0.0
    %175 = vmatpush1.msra.mxu0 0.0
    %176 = vmatprep.mubr.f32.mxu0 0.0
    %177 = vmatmul.mubr.f32.gmra.mrb[0].mxu0 %v110
    %v178 = vpop.f32.mrb[0].mxu0
    %v179 = vadd.f32 %v106, %v178
    %v180 = vpop.f32.mrb[0].mxu0
    %181 = vdwg.mxu0
    %v182 = vxor.u32 %v179, 2147483648
    %v183 = vmul.f32 %v182, 1.442695
    %v184 = vpow.pop %v183
    %v185 = vadd.f32 %v184, 1.0
    %v186 = vrcp.pop %v185
    %v187 = vmul.f32 1.0, %v186
    %v188 = vmul.f32 %v187, 2.0
    %v189 = vsub.f32 %v188, 1.0
    %191 = vrot.lane.b32.xlu0 %v100, 32
    %v192 = vpop.permute.xlu0 %191
    %v194 = vmul.f32 %v187, %v192
    %196 = vrot.lane.b32.xlu0 %v189, 64
    %v197 = vpop.permute.xlu0 %196
    %v199 = vmul.f32 %v187, %v197
    %201 = vrot.lane.b32.xlu0 %v199, 32
    %v202 = vpop.permute.xlu0 %201
    %v204 = vadd.f32 %v194, %v202
    %v205 = vtanh.pop %v204
    %207 = vrot.lane.b32.xlu0 %v205, 64
    %v208 = vpop.permute.xlu0 %207
    %v210 = vmul.f32 %v187, %v208
    %v212 = vlaneseq
    %v213 = vshrl.u32 %v212, 7
    %v214 = vsub.s32 0, %v213
    %v215 = vrot.slane %v98, %v214
    %218 = vrot.lane.b32.xlu0 %v210, 32
    %v219 = vpop.permute.xlu0 %218
    %vm220 = vcmask 261120
    %v221 = vsel %vm220, %v219, 0
    %223 = vmatprep.subr.mxu0 0.0
    %224 = vmatpush1.msra.mxu0 %v94
    %225 = vmatprep.subr.mxu0 0.0
    %226 = vmatpush1.msra.mxu0 %v95
    %227 = vmatprep.subr.mxu0 0.0
    %228 = vmatpush1.msra.mxu0 %v96
    %229 = vmatprep.subr.mxu0 0.0
    %230 = vmatpush1.msra.mxu0 %v97
    %231 = vmatprep.subr.mxu0 0.0
    %232 = vmatpush1.msra.mxu0 0.0
    %233 = vmatprep.subr.mxu0 0.0
    %234 = vmatpush1.msra.mxu0 0.0
    %235 = vmatprep.subr.mxu0 0.0
    %236 = vmatpush1.msra.mxu0 0.0
    %237 = vmatprep.subr.mxu0 0.0
    %238 = vmatpush1.msra.mxu0 0.0
    %239 = vmatprep.subr.mxu0 0.0
    %240 = vmatpush1.msra.mxu0 0.0
    %241 = vmatprep.subr.mxu0 0.0
    %242 = vmatpush1.msra.mxu0 0.0
    %243 = vmatprep.subr.mxu0 0.0
    %244 = vmatpush1.msra.mxu0 0.0
    %245 = vmatprep.subr.mxu0 0.0
    %246 = vmatpush1.msra.mxu0 0.0
    %247 = vmatprep.subr.mxu0 0.0
    %248 = vmatpush1.msra.mxu0 0.0
    %249 = vmatprep.subr.mxu0 0.0
    %250 = vmatpush1.msra.mxu0 0.0
    %251 = vmatprep.subr.mxu0 0.0
    %252 = vmatpush1.msra.mxu0 0.0
    %253 = vmatprep.subr.mxu0 0.0
    %254 = vmatpush1.msra.mxu0 0.0
    %255 = vmatprep.subr.mxu0 0.0
    %256 = vmatpush1.msra.mxu0 0.0
    %257 = vmatprep.subr.mxu0 0.0
    %258 = vmatpush1.msra.mxu0 0.0
    %259 = vmatprep.subr.mxu0 0.0
    %260 = vmatpush1.msra.mxu0 0.0
    %261 = vmatprep.subr.mxu0 0.0
    %262 = vmatpush1.msra.mxu0 0.0
    %263 = vmatprep.subr.mxu0 0.0
    %264 = vmatpush1.msra.mxu0 0.0
    %265 = vmatprep.subr.mxu0 0.0
    %266 = vmatpush1.msra.mxu0 0.0
    %267 = vmatprep.subr.mxu0 0.0
    %268 = vmatpush1.msra.mxu0 0.0
    %269 = vmatprep.subr.mxu0 0.0
    %270 = vmatpush1.msra.mxu0 0.0
    %271 = vmatprep.subr.mxu0 0.0
    %272 = vmatpush1.msra.mxu0 0.0
    %273 = vmatprep.subr.mxu0 0.0
    %274 = vmatpush1.msra.mxu0 0.0
    %275 = vmatprep.subr.mxu0 0.0
    %276 = vmatpush1.msra.mxu0 0.0
    %277 = vmatprep.subr.mxu0 0.0
    %278 = vmatpush1.msra.mxu0 0.0
    %279 = vmatprep.subr.mxu0 0.0
    %280 = vmatpush1.msra.mxu0 0.0
    %281 = vmatprep.subr.mxu0 0.0
    %282 = vmatpush1.msra.mxu0 0.0
    %283 = vmatprep.subr.mxu0 0.0
    %284 = vmatpush1.msra.mxu0 0.0
    %285 = vmatprep.subr.mxu0 0.0
    %286 = vmatpush1.msra.mxu0 0.0
    %287 = vmatprep.mubr.f32.mxu0 0.0
    %288 = vmatmul.mubr.f32.gmra.mrb[0].mxu0 %v221
    %v289 = vpop.f32.mrb[0].mxu0
    %v290 = vadd.f32 %v215, %v289
    %v291 = vpop.f32.mrb[0].mxu0
    %292 = vdwg.mxu0
    %v295 = vunpack.c.l.s4 1966171168
    %v296 = vunpack.c.0.s8 %v295
    %v297 = vlaneseq
    %v298 = vshrl.u32 %v297, 7
    %v299 = vsub.s32 %v296, %v298
    %v300 = vrot.slane %v290, %v299
    %v301 = vcombine.high %v300, %v300
    %v303 = vunpack.c.l.s4 1966171168
    %v304 = vunpack.c.0.s8 %v303
    %v305 = vlaneseq
    %v306 = vshrl.u32 %v305, 7
    %v307 = vsub.s32 %v304, %v306
    %v308 = vrot.slane %v300, %v307
    %v310 = vunpack.c.l.s4 1966171168
    %v311 = vunpack.c.0.s8 %v310
    %v312 = vlaneseq
    %v313 = vshrl.u32 %v312, 7
    %v314 = vsub.s32 %v311, %v313
    %v315 = vrot.slane %v301, %v314
    %v316 = vsel %vm220, %v308, 0
    %v319 = vsel %vm220, %v83, 0
    %321 = vmatprep.subr.mxu0 0.0
    %322 = vmatpush1.xpose.msra.mxu0 %v319
    %323 = vmatprep.subr.mxu0 0.0
    %324 = vmatpush1.xpose.msra.mxu0 0.0
    %325 = vmatprep.subr.mxu0 0.0
    %326 = vmatpush1.xpose.msra.mxu0 0.0
    %327 = vmatprep.subr.mxu0 0.0
    %328 = vmatpush1.xpose.msra.mxu0 0.0
    %329 = vmatprep.subr.mxu0 0.0
    %330 = vmatpush1.xpose.msra.mxu0 0.0
    %331 = vmatprep.subr.mxu0 0.0
    %332 = vmatpush1.xpose.msra.mxu0 0.0
    %333 = vmatprep.subr.mxu0 0.0
    %334 = vmatpush1.xpose.msra.mxu0 0.0
    %335 = vmatprep.subr.mxu0 0.0
    %336 = vmatpush1.xpose.msra.mxu0 0.0
    %337 = vmatprep.subr.mxu0 0.0
    %338 = vmatpush1.xpose.msra.mxu0 0.0
    %339 = vmatprep.subr.mxu0 0.0
    %340 = vmatpush1.xpose.msra.mxu0 0.0
    %341 = vmatprep.subr.mxu0 0.0
    %342 = vmatpush1.xpose.msra.mxu0 0.0
    %343 = vmatprep.subr.mxu0 0.0
    %344 = vmatpush1.xpose.msra.mxu0 0.0
    %345 = vmatprep.subr.mxu0 0.0
    %346 = vmatpush1.xpose.msra.mxu0 0.0
    %347 = vmatprep.subr.mxu0 0.0
    %348 = vmatpush1.xpose.msra.mxu0 0.0
    %349 = vmatprep.subr.mxu0 0.0
    %350 = vmatpush1.xpose.msra.mxu0 0.0
    %351 = vmatprep.subr.mxu0 0.0
    %352 = vmatpush1.xpose.msra.mxu0 0.0
    %353 = vmatprep.subr.mxu0 0.0
    %354 = vmatpush1.xpose.msra.mxu0 0.0
    %355 = vmatprep.subr.mxu0 0.0
    %356 = vmatpush1.xpose.msra.mxu0 0.0
    %357 = vmatprep.subr.mxu0 0.0
    %358 = vmatpush1.xpose.msra.mxu0 0.0
    %359 = vmatprep.subr.mxu0 0.0
    %360 = vmatpush1.xpose.msra.mxu0 0.0
    %361 = vmatprep.subr.mxu0 0.0
    %362 = vmatpush1.xpose.msra.mxu0 0.0
    %363 = vmatprep.subr.mxu0 0.0
    %364 = vmatpush1.xpose.msra.mxu0 0.0
    %365 = vmatprep.subr.mxu0 0.0
    %366 = vmatpush1.xpose.msra.mxu0 0.0
    %367 = vmatprep.subr.mxu0 0.0
    %368 = vmatpush1.xpose.msra.mxu0 0.0
    %369 = vmatprep.subr.mxu0 0.0
    %370 = vmatpush1.xpose.msra.mxu0 0.0
    %371 = vmatprep.subr.mxu0 0.0
    %372 = vmatpush1.xpose.msra.mxu0 0.0
    %373 = vmatprep.subr.mxu0 0.0
    %374 = vmatpush1.xpose.msra.mxu0 0.0
    %375 = vmatprep.subr.mxu0 0.0
    %376 = vmatpush1.xpose.msra.mxu0 0.0
    %377 = vmatprep.subr.mxu0 0.0
    %378 = vmatpush1.xpose.msra.mxu0 0.0
    %379 = vmatprep.subr.mxu0 0.0
    %380 = vmatpush1.xpose.msra.mxu0 0.0
    %381 = vmatprep.subr.mxu0 0.0
    %382 = vmatpush1.xpose.msra.mxu0 0.0
    %383 = vmatprep.subr.mxu0 0.0
    %384 = vmatpush1.xpose.msra.mxu0 0.0
    %385 = vmatprep.mubr.f32.mxu0 0.0
    %386 = vmatmul.mubr.f32.gmra.mrb[0].mxu0 %v316
    %v387 = vpop.f32.mrb[0].mxu0
    %v388 = vadd.f32 0.0, %v387
    %v389 = vpop.f32.mrb[0].mxu0
    %390 = vdwg.mxu0
    %v391 = vsel %vm220, %v315, 0
    %v394 = vsel %vm220, %v84, 0
    %396 = vmatprep.subr.mxu0 0.0
    %397 = vmatpush1.xpose.msra.mxu0 %v394
    %398 = vmatprep.subr.mxu0 0.0
    %399 = vmatpush1.xpose.msra.mxu0 0.0
    %400 = vmatprep.subr.mxu0 0.0
    %401 = vmatpush1.xpose.msra.mxu0 0.0
    %402 = vmatprep.subr.mxu0 0.0
    %403 = vmatpush1.xpose.msra.mxu0 0.0
    %404 = vmatprep.subr.mxu0 0.0
    %405 = vmatpush1.xpose.msra.mxu0 0.0
    %406 = vmatprep.subr.mxu0 0.0
    %407 = vmatpush1.xpose.msra.mxu0 0.0
    %408 = vmatprep.subr.mxu0 0.0
    %409 = vmatpush1.xpose.msra.mxu0 0.0
    %410 = vmatprep.subr.mxu0 0.0
    %411 = vmatpush1.xpose.msra.mxu0 0.0
    %412 = vmatprep.subr.mxu0 0.0
    %413 = vmatpush1.xpose.msra.mxu0 0.0
    %414 = vmatprep.subr.mxu0 0.0
    %415 = vmatpush1.xpose.msra.mxu0 0.0
    %416 = vmatprep.subr.mxu0 0.0
    %417 = vmatpush1.xpose.msra.mxu0 0.0
    %418 = vmatprep.subr.mxu0 0.0
    %419 = vmatpush1.xpose.msra.mxu0 0.0
    %420 = vmatprep.subr.mxu0 0.0
    %421 = vmatpush1.xpose.msra.mxu0 0.0
    %422 = vmatprep.subr.mxu0 0.0
    %423 = vmatpush1.xpose.msra.mxu0 0.0
    %424 = vmatprep.subr.mxu0 0.0
    %425 = vmatpush1.xpose.msra.mxu0 0.0
    %426 = vmatprep.subr.mxu0 0.0
    %427 = vmatpush1.xpose.msra.mxu0 0.0
    %428 = vmatprep.subr.mxu0 0.0
    %429 = vmatpush1.xpose.msra.mxu0 0.0
    %430 = vmatprep.subr.mxu0 0.0
    %431 = vmatpush1.xpose.msra.mxu0 0.0
    %432 = vmatprep.subr.mxu0 0.0
    %433 = vmatpush1.xpose.msra.mxu0 0.0
    %434 = vmatprep.subr.mxu0 0.0
    %435 = vmatpush1.xpose.msra.mxu0 0.0
    %436 = vmatprep.subr.mxu0 0.0
    %437 = vmatpush1.xpose.msra.mxu0 0.0
    %438 = vmatprep.subr.mxu0 0.0
    %439 = vmatpush1.xpose.msra.mxu0 0.0
    %440 = vmatprep.subr.mxu0 0.0
    %441 = vmatpush1.xpose.msra.mxu0 0.0
    %442 = vmatprep.subr.mxu0 0.0
    %443 = vmatpush1.xpose.msra.mxu0 0.0
    %444 = vmatprep.subr.mxu0 0.0
    %445 = vmatpush1.xpose.msra.mxu0 0.0
    %446 = vmatprep.subr.mxu0 0.0
    %447 = vmatpush1.xpose.msra.mxu0 0.0
    %448 = vmatprep.subr.mxu0 0.0
    %449 = vmatpush1.xpose.msra.mxu0 0.0
    %450 = vmatprep.subr.mxu0 0.0
    %451 = vmatpush1.xpose.msra.mxu0 0.0
    %452 = vmatprep.subr.mxu0 0.0
    %453 = vmatpush1.xpose.msra.mxu0 0.0
    %454 = vmatprep.subr.mxu0 0.0
    %455 = vmatpush1.xpose.msra.mxu0 0.0
    %456 = vmatprep.subr.mxu0 0.0
    %457 = vmatpush1.xpose.msra.mxu0 0.0
    %458 = vmatprep.subr.mxu0 0.0
    %459 = vmatpush1.xpose.msra.mxu0 0.0
    %460 = vmatprep.mubr.f32.mxu0 0.0
    %461 = vmatmul.mubr.f32.gmra.mrb[0].mxu0 %v391
    %v462 = vpop.f32.mrb[0].mxu0
    %v463 = vadd.f32 0.0, %v462
    %v464 = vpop.f32.mrb[0].mxu0
    %465 = vdwg.mxu0
    %v467 = vrot.slane %v85, 1
    %v470 = vadd.f32 %v388, %v85
    %v471 = vadd.f32 %v463, %v467
    %v474 = vrot.slane %v471, 7
    %vm475 = vcmask 1041409
    %v476 = vsel %vm475, %v474, %v470
    %vm478 = vcmask 58368
    %v479 = vsel %vm478, %v476, -inf
    %480 = vmax.xlane.f32.xlu0 %v479
    %v481 = vpop.xlane.xlu0 %480
    %v483 = vrot.slane %v481, 1
    %v486 = vsub.f32 %v470, %v481
    %v487 = vsub.f32 %v471, %v483
    %v488 = vmul.f32 %v486, 1.442695
    %v489 = vpow.pop %v488
    %v490 = vmul.f32 %v487, 1.442695
    %v491 = vpow.pop %v490
    %v494 = vrot.slane %v491, 7
    %v495 = vsel %vm475, %v494, %v489
    %v497 = vsel %vm478, %v495, 0.0
    %498 = vadd.xlane.f32.xlu0 %v497
    %v499 = vpop.xlane.xlu0 %498
    %v500 = vrcp.pop %v499
    %v502 = vrot.slane %v500, 1
    %v505 = vmul.f32 %v489, %v500
    %v506 = vmul.f32 %v491, %v502
    %vm507 = vcmask 64512
    %v509 = vsel %vm507, %v505, 0
    %511 = vmatprep.subr.mxu0 0.0
    %512 = vmatpush1.msra.mxu0 %v83
    %513 = vmatprep.subr.mxu0 0.0
    %514 = vmatpush1.msra.mxu0 0.0
    %515 = vmatprep.subr.mxu0 0.0
    %516 = vmatpush1.msra.mxu0 0.0
    %517 = vmatprep.subr.mxu0 0.0
    %518 = vmatpush1.msra.mxu0 0.0
    %519 = vmatprep.subr.mxu0 0.0
    %520 = vmatpush1.msra.mxu0 0.0
    %521 = vmatprep.subr.mxu0 0.0
    %522 = vmatpush1.msra.mxu0 0.0
    %523 = vmatprep.subr.mxu0 0.0
    %524 = vmatpush1.msra.mxu0 0.0
    %525 = vmatprep.subr.mxu0 0.0
    %526 = vmatpush1.msra.mxu0 0.0
    %527 = vmatprep.subr.mxu0 0.0
    %528 = vmatpush1.msra.mxu0 0.0
    %529 = vmatprep.subr.mxu0 0.0
    %530 = vmatpush1.msra.mxu0 0.0
    %531 = vmatprep.subr.mxu0 0.0
    %532 = vmatpush1.msra.mxu0 0.0
    %533 = vmatprep.subr.mxu0 0.0
    %534 = vmatpush1.msra.mxu0 0.0
    %535 = vmatprep.subr.mxu0 0.0
    %536 = vmatpush1.msra.mxu0 0.0
    %537 = vmatprep.subr.mxu0 0.0
    %538 = vmatpush1.msra.mxu0 0.0
    %539 = vmatprep.subr.mxu0 0.0
    %540 = vmatpush1.msra.mxu0 0.0
    %541 = vmatprep.subr.mxu0 0.0
    %542 = vmatpush1.msra.mxu0 0.0
    %543 = vmatprep.subr.mxu0 0.0
    %544 = vmatpush1.msra.mxu0 0.0
    %545 = vmatprep.subr.mxu0 0.0
    %546 = vmatpush1.msra.mxu0 0.0
    %547 = vmatprep.subr.mxu0 0.0
    %548 = vmatpush1.msra.mxu0 0.0
    %549 = vmatprep.subr.mxu0 0.0
    %550 = vmatpush1.msra.mxu0 0.0
    %551 = vmatprep.subr.mxu0 0.0
    %552 = vmatpush1.msra.mxu0 0.0
    %553 = vmatprep.subr.mxu0 0.0
    %554 = vmatpush1.msra.mxu0 0.0
    %555 = vmatprep.subr.mxu0 0.0
    %556 = vmatpush1.msra.mxu0 0.0
    %557 = vmatprep.subr.mxu0 0.0
    %558 = vmatpush1.msra.mxu0 0.0
    %559 = vmatprep.subr.mxu0 0.0
    %560 = vmatpush1.msra.mxu0 0.0
    %561 = vmatprep.subr.mxu0 0.0
    %562 = vmatpush1.msra.mxu0 0.0
    %563 = vmatprep.subr.mxu0 0.0
    %564 = vmatpush1.msra.mxu0 0.0
    %565 = vmatprep.subr.mxu0 0.0
    %566 = vmatpush1.msra.mxu0 0.0
    %567 = vmatprep.subr.mxu0 0.0
    %568 = vmatpush1.msra.mxu0 0.0
    %569 = vmatprep.subr.mxu0 0.0
    %570 = vmatpush1.msra.mxu0 0.0
    %571 = vmatprep.subr.mxu0 0.0
    %572 = vmatpush1.msra.mxu0 0.0
    %573 = vmatprep.subr.mxu0 0.0
    %574 = vmatpush1.msra.mxu0 0.0
    %575 = vmatprep.mubr.f32.mxu0 0.0
    %576 = vmatmul.mubr.f32.gmra.mrb[0].mxu0 %v509
    %v577 = vpop.f32.mrb[0].mxu0
    %v578 = vadd.f32 0.0, %v577
    %v579 = vpop.f32.mrb[0].mxu0
    %580 = vdwg.mxu0
    %v582 = vsel %vm507, %v506, 0
    %584 = vmatprep.subr.mxu0 0.0
    %585 = vmatpush1.msra.mxu0 %v84
    %586 = vmatprep.subr.mxu0 0.0
    %587 = vmatpush1.msra.mxu0 0.0
    %588 = vmatprep.subr.mxu0 0.0
    %589 = vmatpush1.msra.mxu0 0.0
    %590 = vmatprep.subr.mxu0 0.0
    %591 = vmatpush1.msra.mxu0 0.0
    %592 = vmatprep.subr.mxu0 0.0
    %593 = vmatpush1.msra.mxu0 0.0
    %594 = vmatprep.subr.mxu0 0.0
    %595 = vmatpush1.msra.mxu0 0.0
    %596 = vmatprep.subr.mxu0 0.0
    %597 = vmatpush1.msra.mxu0 0.0
    %598 = vmatprep.subr.mxu0 0.0
    %599 = vmatpush1.msra.mxu0 0.0
    %600 = vmatprep.subr.mxu0 0.0
    %601 = vmatpush1.msra.mxu0 0.0
    %602 = vmatprep.subr.mxu0 0.0
    %603 = vmatpush1.msra.mxu0 0.0
    %604 = vmatprep.subr.mxu0 0.0
    %605 = vmatpush1.msra.mxu0 0.0
    %606 = vmatprep.subr.mxu0 0.0
    %607 = vmatpush1.msra.mxu0 0.0
    %608 = vmatprep.subr.mxu0 0.0
    %609 = vmatpush1.msra.mxu0 0.0
    %610 = vmatprep.subr.mxu0 0.0
    %611 = vmatpush1.msra.mxu0 0.0
    %612 = vmatprep.subr.mxu0 0.0
    %613 = vmatpush1.msra.mxu0 0.0
    %614 = vmatprep.subr.mxu0 0.0
    %615 = vmatpush1.msra.mxu0 0.0
    %616 = vmatprep.subr.mxu0 0.0
    %617 = vmatpush1.msra.mxu0 0.0
    %618 = vmatprep.subr.mxu0 0.0
    %619 = vmatpush1.msra.mxu0 0.0
    %620 = vmatprep.subr.mxu0 0.0
    %621 = vmatpush1.msra.mxu0 0.0
    %622 = vmatprep.subr.mxu0 0.0
    %623 = vmatpush1.msra.mxu0 0.0
    %624 = vmatprep.subr.mxu0 0.0
    %625 = vmatpush1.msra.mxu0 0.0
    %626 = vmatprep.subr.mxu0 0.0
    %627 = vmatpush1.msra.mxu0 0.0
    %628 = vmatprep.subr.mxu0 0.0
    %629 = vmatpush1.msra.mxu0 0.0
    %630 = vmatprep.subr.mxu0 0.0
    %631 = vmatpush1.msra.mxu0 0.0
    %632 = vmatprep.subr.mxu0 0.0
    %633 = vmatpush1.msra.mxu0 0.0
    %634 = vmatprep.subr.mxu0 0.0
    %635 = vmatpush1.msra.mxu0 0.0
    %636 = vmatprep.subr.mxu0 0.0
    %637 = vmatpush1.msra.mxu0 0.0
    %638 = vmatprep.subr.mxu0 0.0
    %639 = vmatpush1.msra.mxu0 0.0
    %640 = vmatprep.subr.mxu0 0.0
    %641 = vmatpush1.msra.mxu0 0.0
    %642 = vmatprep.subr.mxu0 0.0
    %643 = vmatpush1.msra.mxu0 0.0
    %644 = vmatprep.subr.mxu0 0.0
    %645 = vmatpush1.msra.mxu0 0.0
    %646 = vmatprep.subr.mxu0 0.0
    %647 = vmatpush1.msra.mxu0 0.0
    %648 = vmatprep.mubr.f32.mxu0 0.0
    %649 = vmatmul.mubr.f32.gmra.mrb[0].mxu0 %v582
    %v650 = vpop.f32.mrb[0].mxu0
    %v651 = vadd.f32 0.0, %v650
    %v652 = vpop.f32.mrb[0].mxu0
    %653 = vdwg.mxu0
    %v654 = vlaneseq
    %v655 = vshrl.u32 %v654, 7
    %v656 = vsub.s32 0, %v655
    %v657 = vrot.slane %v308, %v656
    %658 = vrot.lane.b32.xlu0 %v657, 96
    %v659 = vpop.permute.xlu0 %658
    %v660 = vsel %vm220, %v659, 0
    %662 = vmatprep.subr.mxu0 0.0
    %663 = vmatpush1.xpose.msra.mxu0 %v319
    %664 = vmatprep.subr.mxu0 0.0
    %665 = vmatpush1.xpose.msra.mxu0 0.0
    %666 = vmatprep.subr.mxu0 0.0
    %667 = vmatpush1.xpose.msra.mxu0 0.0
    %668 = vmatprep.subr.mxu0 0.0
    %669 = vmatpush1.xpose.msra.mxu0 0.0
    %670 = vmatprep.subr.mxu0 0.0
    %671 = vmatpush1.xpose.msra.mxu0 0.0
    %672 = vmatprep.subr.mxu0 0.0
    %673 = vmatpush1.xpose.msra.mxu0 0.0
    %674 = vmatprep.subr.mxu0 0.0
    %675 = vmatpush1.xpose.msra.mxu0 0.0
    %676 = vmatprep.subr.mxu0 0.0
    %677 = vmatpush1.xpose.msra.mxu0 0.0
    %678 = vmatprep.subr.mxu0 0.0
    %679 = vmatpush1.xpose.msra.mxu0 0.0
    %680 = vmatprep.subr.mxu0 0.0
    %681 = vmatpush1.xpose.msra.mxu0 0.0
    %682 = vmatprep.subr.mxu0 0.0
    %683 = vmatpush1.xpose.msra.mxu0 0.0
    %684 = vmatprep.subr.mxu0 0.0
    %685 = vmatpush1.xpose.msra.mxu0 0.0
    %686 = vmatprep.subr.mxu0 0.0
    %687 = vmatpush1.xpose.msra.mxu0 0.0
    %688 = vmatprep.subr.mxu0 0.0
    %689 = vmatpush1.xpose.msra.mxu0 0.0
    %690 = vmatprep.subr.mxu0 0.0
    %691 = vmatpush1.xpose.msra.mxu0 0.0
    %692 = vmatprep.subr.mxu0 0.0
    %693 = vmatpush1.xpose.msra.mxu0 0.0
    %694 = vmatprep.subr.mxu0 0.0
    %695 = vmatpush1.xpose.msra.mxu0 0.0
    %696 = vmatprep.subr.mxu0 0.0
    %697 = vmatpush1.xpose.msra.mxu0 0.0
    %698 = vmatprep.subr.mxu0 0.0
    %699 = vmatpush1.xpose.msra.mxu0 0.0
    %700 = vmatprep.subr.mxu0 0.0
    %701 = vmatpush1.xpose.msra.mxu0 0.0
    %702 = vmatprep.subr.mxu0 0.0
    %703 = vmatpush1.xpose.msra.mxu0 0.0
    %704 = vmatprep.subr.mxu0 0.0
    %705 = vmatpush1.xpose.msra.mxu0 0.0
    %706 = vmatprep.subr.mxu0 0.0
    %707 = vmatpush1.xpose.msra.mxu0 0.0
    %708 = vmatprep.subr.mxu0 0.0
    %709 = vmatpush1.xpose.msra.mxu0 0.0
    %710 = vmatprep.subr.mxu0 0.0
    %711 = vmatpush1.xpose.msra.mxu0 0.0
    %712 = vmatprep.subr.mxu0 0.0
    %713 = vmatpush1.xpose.msra.mxu0 0.0
    %714 = vmatprep.subr.mxu0 0.0
    %715 = vmatpush1.xpose.msra.mxu0 0.0
    %716 = vmatprep.subr.mxu0 0.0
    %717 = vmatpush1.xpose.msra.mxu0 0.0
    %718 = vmatprep.subr.mxu0 0.0
    %719 = vmatpush1.xpose.msra.mxu0 0.0
    %720 = vmatprep.subr.mxu0 0.0
    %721 = vmatpush1.xpose.msra.mxu0 0.0
    %722 = vmatprep.subr.mxu0 0.0
    %723 = vmatpush1.xpose.msra.mxu0 0.0
    %724 = vmatprep.subr.mxu0 0.0
    %725 = vmatpush1.xpose.msra.mxu0 0.0
    %726 = vmatprep.mubr.f32.mxu0 0.0
    %727 = vmatmul.mubr.f32.gmra.mrb[0].mxu0 %v660
    %v728 = vpop.f32.mrb[0].mxu0
    %v729 = vadd.f32 0.0, %v728
    %v730 = vpop.f32.mrb[0].mxu0
    %731 = vdwg.mxu0
    %v732 = vlaneseq
    %v733 = vshrl.u32 %v732, 7
    %v734 = vsub.s32 0, %v733
    %v735 = vrot.slane %v315, %v734
    %736 = vrot.lane.b32.xlu0 %v735, 96
    %v737 = vpop.permute.xlu0 %736
    %v738 = vsel %vm220, %v737, 0
    %740 = vmatprep.subr.mxu0 0.0
    %741 = vmatpush1.xpose.msra.mxu0 %v394
    %742 = vmatprep.subr.mxu0 0.0
    %743 = vmatpush1.xpose.msra.mxu0 0.0
    %744 = vmatprep.subr.mxu0 0.0
    %745 = vmatpush1.xpose.msra.mxu0 0.0
    %746 = vmatprep.subr.mxu0 0.0
    %747 = vmatpush1.xpose.msra.mxu0 0.0
    %748 = vmatprep.subr.mxu0 0.0
    %749 = vmatpush1.xpose.msra.mxu0 0.0
    %750 = vmatprep.subr.mxu0 0.0
    %751 = vmatpush1.xpose.msra.mxu0 0.0
    %752 = vmatprep.subr.mxu0 0.0
    %753 = vmatpush1.xpose.msra.mxu0 0.0
    %754 = vmatprep.subr.mxu0 0.0
    %755 = vmatpush1.xpose.msra.mxu0 0.0
    %756 = vmatprep.subr.mxu0 0.0
    %757 = vmatpush1.xpose.msra.mxu0 0.0
    %758 = vmatprep.subr.mxu0 0.0
    %759 = vmatpush1.xpose.msra.mxu0 0.0
    %760 = vmatprep.subr.mxu0 0.0
    %761 = vmatpush1.xpose.msra.mxu0 0.0
    %762 = vmatprep.subr.mxu0 0.0
    %763 = vmatpush1.xpose.msra.mxu0 0.0
    %764 = vmatprep.subr.mxu0 0.0
    %765 = vmatpush1.xpose.msra.mxu0 0.0
    %766 = vmatprep.subr.mxu0 0.0
    %767 = vmatpush1.xpose.msra.mxu0 0.0
    %768 = vmatprep.subr.mxu0 0.0
    %769 = vmatpush1.xpose.msra.mxu0 0.0
    %770 = vmatprep.subr.mxu0 0.0
    %771 = vmatpush1.xpose.msra.mxu0 0.0
    %772 = vmatprep.subr.mxu0 0.0
    %773 = vmatpush1.xpose.msra.mxu0 0.0
    %774 = vmatprep.subr.mxu0 0.0
    %775 = vmatpush1.xpose.msra.mxu0 0.0
    %776 = vmatprep.subr.mxu0 0.0
    %777 = vmatpush1.xpose.msra.mxu0 0.0
    %778 = vmatprep.subr.mxu0 0.0
    %779 = vmatpush1.xpose.msra.mxu0 0.0
    %780 = vmatprep.subr.mxu0 0.0
    %781 = vmatpush1.xpose.msra.mxu0 0.0
    %782 = vmatprep.subr.mxu0 0.0
    %783 = vmatpush1.xpose.msra.mxu0 0.0
    %784 = vmatprep.subr.mxu0 0.0
    %785 = vmatpush1.xpose.msra.mxu0 0.0
    %786 = vmatprep.subr.mxu0 0.0
    %787 = vmatpush1.xpose.msra.mxu0 0.0
    %788 = vmatprep.subr.mxu0 0.0
    %789 = vmatpush1.xpose.msra.mxu0 0.0
    %790 = vmatprep.subr.mxu0 0.0
    %791 = vmatpush1.xpose.msra.mxu0 0.0
    %792 = vmatprep.subr.mxu0 0.0
    %793 = vmatpush1.xpose.msra.mxu0 0.0
    %794 = vmatprep.subr.mxu0 0.0
    %795 = vmatpush1.xpose.msra.mxu0 0.0
    %796 = vmatprep.subr.mxu0 0.0
    %797 = vmatpush1.xpose.msra.mxu0 0.0
    %798 = vmatprep.subr.mxu0 0.0
    %799 = vmatpush1.xpose.msra.mxu0 0.0
    %800 = vmatprep.subr.mxu0 0.0
    %801 = vmatpush1.xpose.msra.mxu0 0.0
    %802 = vmatprep.subr.mxu0 0.0
    %803 = vmatpush1.xpose.msra.mxu0 0.0
    %804 = vmatprep.mubr.f32.mxu0 0.0
    %805 = vmatmul.mubr.f32.gmra.mrb[0].mxu0 %v738
    %v806 = vpop.f32.mrb[0].mxu0
    %v807 = vadd.f32 0.0, %v806
    %v808 = vpop.f32.mrb[0].mxu0
    %809 = vdwg.mxu0
    %v810 = vadd.f32 %v729, %v85
    %v811 = vadd.f32 %v807, %v467
    %v814 = vrot.slane %v811, 7
    %v815 = vsel %vm475, %v814, %v810
    %v817 = vsel %vm478, %v815, -inf
    %818 = vmax.xlane.f32.xlu0 %v817
    %v819 = vpop.xlane.xlu0 %818
    %v821 = vrot.slane %v819, 1
    %v824 = vsub.f32 %v810, %v819
    %v825 = vsub.f32 %v811, %v821
    %v826 = vmul.f32 %v824, 1.442695
    %v827 = vpow.pop %v826
    %v828 = vmul.f32 %v825, 1.442695
    %v829 = vpow.pop %v828
    %v832 = vrot.slane %v829, 7
    %v833 = vsel %vm475, %v832, %v827
    %v835 = vsel %vm478, %v833, 0.0
    %836 = vadd.xlane.f32.xlu0 %v835
    %v837 = vpop.xlane.xlu0 %836
    %v838 = vrcp.pop %v837
    %v840 = vrot.slane %v838, 1
    %v843 = vmul.f32 %v827, %v838
    %v844 = vmul.f32 %v829, %v840
    %v846 = vsel %vm507, %v843, 0
    %848 = vmatprep.subr.mxu0 0.0
    %849 = vmatpush1.msra.mxu0 %v83
    %850 = vmatprep.subr.mxu0 0.0
    %851 = vmatpush1.msra.mxu0 0.0
    %852 = vmatprep.subr.mxu0 0.0
    %853 = vmatpush1.msra.mxu0 0.0
    %854 = vmatprep.subr.mxu0 0.0
    %855 = vmatpush1.msra.mxu0 0.0
    %856 = vmatprep.subr.mxu0 0.0
    %857 = vmatpush1.msra.mxu0 0.0
    %858 = vmatprep.subr.mxu0 0.0
    %859 = vmatpush1.msra.mxu0 0.0
    %860 = vmatprep.subr.mxu0 0.0
    %861 = vmatpush1.msra.mxu0 0.0
    %862 = vmatprep.subr.mxu0 0.0
    %863 = vmatpush1.msra.mxu0 0.0
    %864 = vmatprep.subr.mxu0 0.0
    %865 = vmatpush1.msra.mxu0 0.0
    %866 = vmatprep.subr.mxu0 0.0
    %867 = vmatpush1.msra.mxu0 0.0
    %868 = vmatprep.subr.mxu0 0.0
    %869 = vmatpush1.msra.mxu0 0.0
    %870 = vmatprep.subr.mxu0 0.0
    %871 = vmatpush1.msra.mxu0 0.0
    %872 = vmatprep.subr.mxu0 0.0
    %873 = vmatpush1.msra.mxu0 0.0
    %874 = vmatprep.subr.mxu0 0.0
    %875 = vmatpush1.msra.mxu0 0.0
    %876 = vmatprep.subr.mxu0 0.0
    %877 = vmatpush1.msra.mxu0 0.0
    %878 = vmatprep.subr.mxu0 0.0
    %879 = vmatpush1.msra.mxu0 0.0
    %880 = vmatprep.subr.mxu0 0.0
    %881 = vmatpush1.msra.mxu0 0.0
    %882 = vmatprep.subr.mxu0 0.0
    %883 = vmatpush1.msra.mxu0 0.0
    %884 = vmatprep.subr.mxu0 0.0
    %885 = vmatpush1.msra.mxu0 0.0
    %886 = vmatprep.subr.mxu0 0.0
    %887 = vmatpush1.msra.mxu0 0.0
    %888 = vmatprep.subr.mxu0 0.0
    %889 = vmatpush1.msra.mxu0 0.0
    %890 = vmatprep.subr.mxu0 0.0
    %891 = vmatpush1.msra.mxu0 0.0
    %892 = vmatprep.subr.mxu0 0.0
    %893 = vmatpush1.msra.mxu0 0.0
    %894 = vmatprep.subr.mxu0 0.0
    %895 = vmatpush1.msra.mxu0 0.0
    %896 = vmatprep.subr.mxu0 0.0
    %897 = vmatpush1.msra.mxu0 0.0
    %898 = vmatprep.subr.mxu0 0.0
    %899 = vmatpush1.msra.mxu0 0.0
    %900 = vmatprep.subr.mxu0 0.0
    %901 = vmatpush1.msra.mxu0 0.0
    %902 = vmatprep.subr.mxu0 0.0
    %903 = vmatpush1.msra.mxu0 0.0
    %904 = vmatprep.subr.mxu0 0.0
    %905 = vmatpush1.msra.mxu0 0.0
    %906 = vmatprep.subr.mxu0 0.0
    %907 = vmatpush1.msra.mxu0 0.0
    %908 = vmatprep.subr.mxu0 0.0
    %909 = vmatpush1.msra.mxu0 0.0
    %910 = vmatprep.subr.mxu0 0.0
    %911 = vmatpush1.msra.mxu0 0.0
    %912 = vmatprep.mubr.f32.mxu0 0.0
    %913 = vmatmul.mubr.f32.gmra.mrb[0].mxu0 %v846
    %v914 = vpop.f32.mrb[0].mxu0
    %v915 = vadd.f32 0.0, %v914
    %v916 = vpop.f32.mrb[0].mxu0
    %917 = vdwg.mxu0
    %v919 = vsel %vm507, %v844, 0
    %921 = vmatprep.subr.mxu0 0.0
    %922 = vmatpush1.msra.mxu0 %v84
    %923 = vmatprep.subr.mxu0 0.0
    %924 = vmatpush1.msra.mxu0 0.0
    %925 = vmatprep.subr.mxu0 0.0
    %926 = vmatpush1.msra.mxu0 0.0
    %927 = vmatprep.subr.mxu0 0.0
    %928 = vmatpush1.msra.mxu0 0.0
    %929 = vmatprep.subr.mxu0 0.0
    %930 = vmatpush1.msra.mxu0 0.0
    %931 = vmatprep.subr.mxu0 0.0
    %932 = vmatpush1.msra.mxu0 0.0
    %933 = vmatprep.subr.mxu0 0.0
    %934 = vmatpush1.msra.mxu0 0.0
    %935 = vmatprep.subr.mxu0 0.0
    %936 = vmatpush1.msra.mxu0 0.0
    %937 = vmatprep.subr.mxu0 0.0
    %938 = vmatpush1.msra.mxu0 0.0
    %939 = vmatprep.subr.mxu0 0.0
    %940 = vmatpush1.msra.mxu0 0.0
    %941 = vmatprep.subr.mxu0 0.0
    %942 = vmatpush1.msra.mxu0 0.0
    %943 = vmatprep.subr.mxu0 0.0
    %944 = vmatpush1.msra.mxu0 0.0
    %945 = vmatprep.subr.mxu0 0.0
    %946 = vmatpush1.msra.mxu0 0.0
    %947 = vmatprep.subr.mxu0 0.0
    %948 = vmatpush1.msra.mxu0 0.0
    %949 = vmatprep.subr.mxu0 0.0
    %950 = vmatpush1.msra.mxu0 0.0
    %951 = vmatprep.subr.mxu0 0.0
    %952 = vmatpush1.msra.mxu0 0.0
    %953 = vmatprep.subr.mxu0 0.0
    %954 = vmatpush1.msra.mxu0 0.0
    %955 = vmatprep.subr.mxu0 0.0
    %956 = vmatpush1.msra.mxu0 0.0
    %957 = vmatprep.subr.mxu0 0.0
    %958 = vmatpush1.msra.mxu0 0.0
    %959 = vmatprep.subr.mxu0 0.0
    %960 = vmatpush1.msra.mxu0 0.0
    %961 = vmatprep.subr.mxu0 0.0
    %962 = vmatpush1.msra.mxu0 0.0
    %963 = vmatprep.subr.mxu0 0.0
    %964 = vmatpush1.msra.mxu0 0.0
    %965 = vmatprep.subr.mxu0 0.0
    %966 = vmatpush1.msra.mxu0 0.0
    %967 = vmatprep.subr.mxu0 0.0
    %968 = vmatpush1.msra.mxu0 0.0
    %969 = vmatprep.subr.mxu0 0.0
    %970 = vmatpush1.msra.mxu0 0.0
    %971 = vmatprep.subr.mxu0 0.0
    %972 = vmatpush1.msra.mxu0 0.0
    %973 = vmatprep.subr.mxu0 0.0
    %974 = vmatpush1.msra.mxu0 0.0
    %975 = vmatprep.subr.mxu0 0.0
    %976 = vmatpush1.msra.mxu0 0.0
    %977 = vmatprep.subr.mxu0 0.0
    %978 = vmatpush1.msra.mxu0 0.0
    %979 = vmatprep.subr.mxu0 0.0
    %980 = vmatpush1.msra.mxu0 0.0
    %981 = vmatprep.subr.mxu0 0.0
    %982 = vmatpush1.msra.mxu0 0.0
    %983 = vmatprep.subr.mxu0 0.0
    %984 = vmatpush1.msra.mxu0 0.0
    %985 = vmatprep.mubr.f32.mxu0 0.0
    %986 = vmatmul.mubr.f32.gmra.mrb[0].mxu0 %v919
    %v987 = vpop.f32.mrb[0].mxu0
    %v988 = vadd.f32 0.0, %v987
    %v989 = vpop.f32.mrb[0].mxu0
    %990 = vdwg.mxu0
    %v991 = vadd.f32 %v578, %v915
    %v992 = vadd.f32 %v651, %v988
    %v996 = vunpack.c.l.s4 1983009808
    %v997 = vunpack.c.0.s8 %v996
    %v998 = vlaneseq
    %v999 = vshrl.u32 %v998, 7
    %v1000 = vsub.s32 %v997, %v999
    %v1001 = vrot.slane %v578, %v1000
    %v1003 = vunpack.c.l.s4 1983009808
    %v1004 = vunpack.c.0.s8 %v1003
    %v1005 = vlaneseq
    %v1006 = vshrl.u32 %v1005, 7
    %v1007 = vsub.s32 %v1004, %v1006
    %v1008 = vrot.slane %v651, %v1007
    %vm1009 = vcmask 1044484
    %v1010 = vsel %vm1009, %v1001, %v1001
    %vm1011 = vcmask 1046534
    %v1012 = vsel %vm1011, %v1001, %v1010
    %v1013 = vrot.slane %v1008, 7
    %v1014 = vsel %vm475, %v1013, %v1012
    %vm1015 = vcmask 1043459
    %v1016 = vsel %vm1015, %v1013, %v1014
    %vm1017 = vcmask 1045509
    %v1018 = vsel %vm1017, %v1013, %v1016
    %vm1019 = vcmask 1047559
    %v1020 = vsel %vm1019, %v1013, %v1018
    %vm1022 = vcmask 254976
    %1023 = vst.msk [vmem:[#allocation10] sm:$0x3] %vm1022, %v1020
    %v1027 = vunpack.c.l.s4 1983009808
    %v1028 = vunpack.c.0.s8 %v1027
    %v1029 = vlaneseq
    %v1030 = vshrl.u32 %v1029, 7
    %v1031 = vsub.s32 %v1028, %v1030
    %v1032 = vrot.slane %v915, %v1031
    %v1034 = vunpack.c.l.s4 1983009808
    %v1035 = vunpack.c.0.s8 %v1034
    %v1036 = vlaneseq
    %v1037 = vshrl.u32 %v1036, 7
    %v1038 = vsub.s32 %v1035, %v1037
    %v1039 = vrot.slane %v988, %v1038
    %v1040 = vsel %vm1009, %v1032, %v1032
    %v1041 = vsel %vm1011, %v1032, %v1040
    %v1042 = vrot.slane %v1039, 7
    %v1043 = vsel %vm475, %v1042, %v1041
    %v1044 = vsel %vm1015, %v1042, %v1043
    %v1045 = vsel %vm1017, %v1042, %v1044
    %v1046 = vsel %vm1019, %v1042, %v1045
    %1047 = vrot.lane.b32.xlu0 %v1046, 32
    %v1048 = vpop.permute.xlu0 %1047
    %vm1050 = vcmask 517376
    %1051 = vst.msk [vmem:[#allocation10] sm:$0x3] %vm1050, %v1048
    %v1053 = vunpack.c.l.s4 1983009808
    %v1054 = vunpack.c.0.s8 %v1053
    %v1055 = vlaneseq
    %v1056 = vshrl.u32 %v1055, 7
    %v1057 = vsub.s32 %v1054, %v1056
    %v1058 = vrot.slane %v210, %v1057
    %1059 = vrot.lane.b32.xlu0 %v1058, 96
    %v1060 = vpop.permute.xlu0 %1059
    %vm1062 = vcmask 779776
    %1063 = vst.msk [vmem:[#allocation10] sm:$0x3] %vm1062, %v1060
    %v1066 = vunpack.c.l.s4 1983009808
    %v1067 = vunpack.c.0.s8 %v1066
    %v1068 = vlaneseq
    %v1069 = vshrl.u32 %v1068, 7
    %v1070 = vsub.s32 %v1067, %v1069
    %v1071 = vrot.slane %v204, %v1070
    %1072 = vrot.lane.b32.xlu0 %v1071, 64
    %v1073 = vpop.permute.xlu0 %1072
    %vm1075 = vcmask 1042176
    %1076 = vst.msk [vmem:[#allocation10] sm:$0x3] %vm1075, %v1073
    %v1080 = vunpack.c.l.s4 1983009808
    %v1081 = vunpack.c.0.s8 %v1080
    %v1082 = vlaneseq
    %v1083 = vshrl.u32 %v1082, 7
    %v1084 = vsub.s32 %v1081, %v1083
    %v1085 = vrot.slane %v991, %v1084
    %v1087 = vunpack.c.l.s4 1983009808
    %v1088 = vunpack.c.0.s8 %v1087
    %v1089 = vlaneseq
    %v1090 = vshrl.u32 %v1089, 7
    %v1091 = vsub.s32 %v1088, %v1090
    %v1092 = vrot.slane %v992, %v1091
    %v1093 = vsel %vm1009, %v1085, %v1085
    %v1094 = vsel %vm1011, %v1085, %v1093
    %v1095 = vrot.slane %v1092, 7
    %v1096 = vsel %vm475, %v1095, %v1094
    %v1097 = vsel %vm1015, %v1095, %v1096
    %v1098 = vsel %vm1017, %v1095, %v1097
    %v1099 = vsel %vm1019, %v1095, %v1098
    %1101 = vst.msk [vmem:[#allocation10 + $0x2] sm:$0x3] %vm1022, %v1099
    %v1103 = vunpack.c.l.s4 1983009808
    %v1104 = vunpack.c.0.s8 %v1103
    %v1105 = vlaneseq
    %v1106 = vshrl.u32 %v1105, 7
    %v1107 = vsub.s32 %v1104, %v1106
    %v1108 = vrot.slane %v505, %v1107
    %v1110 = vunpack.c.l.s4 1983009808
    %v1111 = vunpack.c.0.s8 %v1110
    %v1112 = vlaneseq
    %v1113 = vshrl.u32 %v1112, 7
    %v1114 = vsub.s32 %v1111, %v1113
    %v1115 = vrot.slane %v506, %v1114
    %v1116 = vsel %vm1009, %v1108, %v1108
    %v1117 = vsel %vm1011, %v1108, %v1116
    %v1118 = vrot.slane %v1115, 7
    %v1119 = vsel %vm475, %v1118, %v1117
    %v1120 = vsel %vm1015, %v1118, %v1119
    %v1121 = vsel %vm1017, %v1118, %v1120
    %v1122 = vsel %vm1019, %v1118, %v1121
    %1123 = vrot.lane.b32.xlu0 %v1122, 32
    %v1124 = vpop.permute.xlu0 %1123
    %vm1126 = vcmask 320768
    %1127 = vst.msk [vmem:[#allocation10 + $0x2] sm:$0x3] %vm1126, %v1124
    %v1129 = vunpack.c.l.s4 1983009808
    %v1130 = vunpack.c.0.s8 %v1129
    %v1131 = vlaneseq
    %v1132 = vshrl.u32 %v1131, 7
    %v1133 = vsub.s32 %v1130, %v1132
    %v1134 = vrot.slane %v843, %v1133
    %v1136 = vunpack.c.l.s4 1983009808
    %v1137 = vunpack.c.0.s8 %v1136
    %v1138 = vlaneseq
    %v1139 = vshrl.u32 %v1138, 7
    %v1140 = vsub.s32 %v1137, %v1139
    %v1141 = vrot.slane %v844, %v1140
    %v1142 = vsel %vm1009, %v1134, %v1134
    %v1143 = vsel %vm1011, %v1134, %v1142
    %v1144 = vrot.slane %v1141, 7
    %v1145 = vsel %vm475, %v1144, %v1143
    %v1146 = vsel %vm1015, %v1144, %v1145
    %v1147 = vsel %vm1017, %v1144, %v1146
    %v1148 = vsel %vm1019, %v1144, %v1147
    %1149 = vrot.lane.b32.xlu0 %v1148, 40
    %v1150 = vpop.permute.xlu0 %1149
    %vm1152 = vcmask 386368
    %1153 = vst.msk [vmem:[#allocation10 + $0x2] sm:$0x3] %vm1152, %v1150
    // Predicated region
    $region50: #{tpu_custom_call.1} parent=1 // pred_check
      _
    $region51: #{tpu_custom_call.1} parent=1 // pred_check_branch
      %1155 = sbr.rel (0) target = $region53
    $region52: #{tpu_custom_call.1} parent=1 // pred_region
      %s1157 = ssub.s32 64, 64
      %1158 = vsyncadd [#allocation4], %s1157
      %s1160 = sshll.u32 [#allocation10], 4
      %s1161 = int_to_ptr.vmem [resolvable:$true] %s1160
      %1163 = dma.vmem_to_hbm [thread:$0]  %s1161, 64, %s8, [#allocation4]
    $region53: #{tpu_custom_call.1} parent=1 // pred_fallthru
      _
    // Predicated region
    $region54: #{tpu_custom_call.1} parent=1 // pred_check
      _
    $region55: #{tpu_custom_call.1} parent=1 // pred_check_branch
      %1165 = sbr.rel (0) target = $region57
    $region56: #{tpu_custom_call.1} parent=1 // pred_region
      %1166 = dma.done [#allocation4], 64
    $region57: #{tpu_custom_call.1} parent=1 // pred_fallthru
      _
    %1167 = vsyncpa [#allocation3], 1
    %1168 = vsyncpa [#allocation6], 1
    %1169 = vsyncpa [#allocation9], 1
    %1170 = vsyncpa [#allocation4], 1

</llo_original>
